<compile_context>
chip_gen: v6e
topology: v6e:2x2x1
jax: 0.10.0
libtpu: 0.0.40
codegen_flags: <defaults>
</compile_context>

<pallas_src>
import functools

import jax
import jax.numpy as jnp
import numpy as np
from jax.experimental import pallas as pl
from jax.experimental.pallas import tpu as pltpu

EPS = 1e-5
HIDDEN = (200, 250, 300, 250, 200, 100, 50, 25)


def _pad_to(n, m):
    return ((int(n) + m - 1) // m) * m


def _pad128(n):
    return _pad_to(n, 128)


def _bn_fold(gamma, beta, mean, var):
    scale = gamma / jnp.sqrt(var + EPS)
    shift = beta - mean * scale
    return scale, shift


# --------------------------------------------------------------------------
# Parameter construction (raw, PyTorch layout) and fold+pack into slabs.
# --------------------------------------------------------------------------
def init_params(key, input_shape, output_shape):
    """Deterministic synthetic parameters in PyTorch layout (eval mode)."""
    _, C, D, H, W = input_shape
    F = C * D * H * W
    dims = [F] + list(HIDDEN) + [output_shape]
    keys = iter(jax.random.split(key, 8 * len(dims) + 8))

    bn3d = dict(
        gamma=1.0 + 0.1 * jax.random.normal(next(keys), (C,), jnp.float32),
        beta=0.05 * jax.random.normal(next(keys), (C,), jnp.float32),
        mean=0.1 * jax.random.normal(next(keys), (C,), jnp.float32),
        var=1.0 + 0.1 * jax.random.uniform(next(keys), (C,), jnp.float32),
    )

    layers = []
    for i in range(len(dims) - 1):
        fan_in, fan_out = dims[i], dims[i + 1]
        w = jax.random.normal(next(keys), (fan_out, fan_in), jnp.float32) / np.sqrt(fan_in)
        b = 0.01 * jax.random.normal(next(keys), (fan_out,), jnp.float32)
        layer = dict(w=w, b=b)
        if i < len(dims) - 2:  # every hidden Linear is followed by BatchNorm1d
            layer["bn"] = dict(
                gamma=1.0 + 0.1 * jax.random.normal(next(keys), (fan_out,), jnp.float32),
                beta=0.05 * jax.random.normal(next(keys), (fan_out,), jnp.float32),
                mean=0.1 * jax.random.normal(next(keys), (fan_out,), jnp.float32),
                var=1.0 + 0.1 * jax.random.uniform(next(keys), (fan_out,), jnp.float32),
            )
        layers.append(layer)
    return dict(bn3d=bn3d, layers=layers, dims=dims, spatial=D * H * W)


def fold_and_pack(params):
    """Fold eval-mode BatchNorms into the Linears and pack padded slabs.

    Returns:
      w_slab   : (sum(KP_i), NPmax) bfloat16  (rows = input feats, cols = outputs)
      b_slab   : (L, 1, NPmax) float32
      k_pads   : per-layer padded input widths  (tuple of ints)
      n_pads   : per-layer padded output widths (tuple of ints)
      row_offs : per-layer row offset into w_slab (tuple of ints, 128-aligned)
    """
    dims = params["dims"]
    k_pads = tuple(_pad128(d) for d in dims[:-1])
    n_pads = tuple(_pad128(d) for d in dims[1:])
    NPmax = max(n_pads)
    L = len(k_pads)
    row_offs = tuple(int(sum(k_pads[:i])) for i in range(L))
    total_rows = int(sum(k_pads))

    # BatchNorm3d -> per-flattened-feature affine (channel-major flatten order).
    s3, t3 = _bn_fold(**params["bn3d"])
    s3f = jnp.repeat(s3, params["spatial"])
    t3f = jnp.repeat(t3, params["spatial"])

    w_slab = jnp.zeros((total_rows, NPmax), jnp.float32)
    b_slab = jnp.zeros((L, 1, NPmax), jnp.float32)
    for i, layer in enumerate(params["layers"]):
        wt = layer["w"].T.astype(jnp.float32)   # (in, out)
        b = layer["b"].astype(jnp.float32)      # (out,)
        if i == 0:
            # y = (x*s3f + t3f) @ wt + b  ->  x @ (s3f[:,None]*wt) + (t3f@wt + b)
            b = b + t3f @ wt
            wt = wt * s3f[:, None]
        if "bn" in layer:
            s, t = _bn_fold(**layer["bn"])
            wt = wt * s[None, :]
            b = b * s + t
        r0 = row_offs[i]
        w_slab = w_slab.at[r0:r0 + wt.shape[0], : wt.shape[1]].set(wt)
        b_slab = b_slab.at[i, 0, : b.shape[0]].set(b)

    return w_slab.astype(jnp.bfloat16), b_slab, k_pads, n_pads, row_offs


# --------------------------------------------------------------------------
# Kernel
# --------------------------------------------------------------------------
def _make_kernel(k_pads, n_pads, row_offs, num_classes):
    L = len(k_pads)

    def kernel(x_ref, w_ref, b_ref, out_ref):
        h = x_ref[...]                                 # (tile_b, FP) bf16
        logits = None
        for i in range(L):
            kp, npd, r0 = k_pads[i], n_pads[i], row_offs[i]
            w = w_ref[r0:r0 + kp, :npd]                # (kp, npd) bf16, VMEM-resident
            b = b_ref[i, :, :npd]                      # (1, npd)  f32
            z = jnp.dot(h, w, preferred_element_type=jnp.float32) + b
            if i < L - 1:
                # ReLU in f32 (BN folded; Dropout = eval no-op), then back to bf16
                h = jnp.maximum(z, 0.0).astype(jnp.bfloat16)
            else:
                logits = z
        # Softmax over the true classes only; padded lanes get probability 0.
        lane = jax.lax.broadcasted_iota(jnp.int32, logits.shape, 1)
        logits = jnp.where(lane < num_classes, logits, -jnp.inf)
        m = jnp.max(logits, axis=1, keepdims=True)
        e = jnp.exp(logits - m)
        denom = jnp.sum(e, axis=1, keepdims=True)
        out_ref[...] = e * pl.reciprocal(denom, approx=True)

    return kernel


# --------------------------------------------------------------------------
# Wrapper
# --------------------------------------------------------------------------
@functools.partial(
    jax.jit, static_argnames=("k_pads", "n_pads", "row_offs", "num_classes"))
def net_forward(x, w_slab, b_slab, *, k_pads, n_pads, row_offs, num_classes):
    B = x.shape[0]
    F = int(np.prod(x.shape[1:]))
    FP = k_pads[0]
    NP_out = n_pads[-1]
    R, NPmax = w_slab.shape
    L = len(k_pads)

    x2 = x.reshape(B, F)                               # nn.Flatten (row-major == PyTorch)
    if FP != F:
        x2 = jnp.pad(x2, ((0, 0), (0, FP - F)))
    x2 = x2.astype(jnp.bfloat16)                       # halve input DMA bytes

    # Batch tiling: single tile (padded to a sublane multiple) for small B;
    # 512-row tiles for large B (parallel grid axis -> megacore on v7x,
    # pipelined input/output DMA).
    if B <= 512:
        tile_b = _pad_to(B, 8)
        bp = tile_b
    else:
        tile_b = 512
        bp = _pad_to(B, tile_b)
    if bp != B:
        x2 = jnp.pad(x2, ((0, bp - B), (0, 0)))

    kernel = _make_kernel(k_pads, n_pads, row_offs, num_classes)

    out = pl.pallas_call(
        kernel,
        out_shape=jax.ShapeDtypeStruct((bp, NP_out), jnp.float32),
        grid_spec=pltpu.PrefetchScalarGridSpec(
            num_scalar_prefetch=0,
            grid=(bp // tile_b,),
            in_specs=[
                pl.BlockSpec((tile_b, FP), lambda i: (i, 0)),
                pl.BlockSpec((R, NPmax), lambda i: (0, 0)),          # resident weights
                pl.BlockSpec((L, 1, NPmax), lambda i: (0, 0, 0)),    # resident biases
            ],
            out_specs=pl.BlockSpec((tile_b, NP_out), lambda i: (i, 0)),
        ),
        compiler_params=pltpu.CompilerParams(
            dimension_semantics=("parallel",),
            vmem_limit_bytes=32 * 1024 * 1024,   # safe on v5e/v6e/v7x; usage ~5 MiB
        ),
    )(x2, w_slab, b_slab)

    return out[:B, :num_classes]


# --------------------------------------------------------------------------
# Pure-JAX reference (mirrors the kernel math on the same folded/packed params)
# --------------------------------------------------------------------------
def net_forward_ref(x, w_slab, b_slab, k_pads, n_pads, row_offs, num_classes):
    B = x.shape[0]
    F = int(np.prod(x.shape[1:]))
    FP = k_pads[0]
    h = x.reshape(B, F).astype(jnp.float32)
    if FP != F:
        h = jnp.pad(h, ((0, 0), (0, FP - F)))
    h = h.astype(jnp.bfloat16)
    L = len(k_pads)
    logits = None
    for i in range(L):
        kp, npd, r0 = k_pads[i], n_pads[i], row_offs[i]
        z = jnp.dot(h, w_slab[r0:r0 + kp, :npd],
                    preferred_element_type=jnp.float32) + b_slab[i, 0, :npd]
        if i < L - 1:
            h = jnp.maximum(z, 0.0).astype(jnp.bfloat16)
        else:
            logits = z
    return jax.nn.softmax(logits[:, :num_classes], axis=1)


if __name__ == "__main__":
    # Small shapes consistent with the module: 5-D input (N, C, D, H, W).
    input_shape = (2, 4, 4, 4, 4)   # -> flattened features = 4*4*4*4 = 256
    output_shape = 10

    key = jax.random.PRNGKey(0)
    k_x, k_p = jax.random.split(key)
    x = jax.random.normal(k_x, input_shape, jnp.float32)

    raw = init_params(k_p, input_shape, output_shape)
    w_slab, b_slab, k_pads, n_pads, row_offs = fold_and_pack(raw)

    out = net_forward(x, w_slab, b_slab, k_pads=k_pads, n_pads=n_pads,
                      row_offs=row_offs, num_classes=output_shape)
    out = jax.block_until_ready(out)

    ref = net_forward_ref(x, w_slab, b_slab, k_pads, n_pads, row_offs, output_shape)
    np.testing.assert_allclose(np.asarray(out), np.asarray(ref), rtol=3e-3, atol=3e-3)
    np.testing.assert_allclose(np.asarray(out).sum(axis=1), np.ones(x.shape[0]),
                               rtol=3e-3, atol=3e-3)
    assert out.shape == (input_shape[0], output_shape)

    print("KERNEL_OK")
</pallas_src>

<mosaic_0001>
module attributes {stable_mosaic.version = 11 : i64} {
  func.func @kernel(%arg0: i32, %arg1: memref<8x256xbf16, #tpu.memory_space<vmem>>, %arg2: memref<2048x384xbf16, #tpu.memory_space<vmem>>, %arg3: memref<9x1x384xf32, #tpu.memory_space<vmem>>, %arg4: memref<8x128xf32, #tpu.memory_space<vmem>>) attributes {dimension_semantics = [#tpu.dimension_semantics<parallel>], iteration_bounds = array<i64: 1>, scalar_prefetch = 0 : i64, scratch_operands = 0 : i64, tpu.core_type = #tpu.core_type<tc>, window_params = [{transform_indices = @transform_0, window_bounds = array<i64: 8, 256>}, {pipeline_mode = #tpu.pipeline_mode<synchronous>, transform_indices = @transform_1, window_bounds = array<i64: 2048, 384>}, {pipeline_mode = #tpu.pipeline_mode<synchronous>, transform_indices = @transform_2, window_bounds = array<i64: 9, 1, 384>}, {transform_indices = @transform_3, window_bounds = array<i64: 8, 128>}]} {
    %c0 = arith.constant 0 : index
    %c0_0 = arith.constant 0 : index
    %0 = vector.load %arg1[%c0, %c0_0] : memref<8x256xbf16, #tpu.memory_space<vmem>>, vector<8x256xbf16>
    %c0_1 = arith.constant 0 : index
    %c0_2 = arith.constant 0 : index
    %1 = vector.load %arg2[%c0_1, %c0_2] : memref<2048x384xbf16, #tpu.memory_space<vmem>>, vector<256x256xbf16>
    %c0_3 = arith.constant 0 : index
    %c0_4 = arith.constant 0 : index
    %c0_5 = arith.constant 0 : index
    %2 = vector.load %arg3[%c0_3, %c0_4, %c0_5] : memref<9x1x384xf32, #tpu.memory_space<vmem>>, vector<1x1x256xf32>
    %3 = vector.shape_cast %2 : vector<1x1x256xf32> to vector<1x256xf32>
    %cst = arith.constant dense<0.000000e+00> : vector<8x256xf32>
    %4 = tpu.matmul %0, %1, %cst {dimension_numbers = #tpu.dot_dimension_numbers<[1], [0], [0], [1], [0, 0, 1, 1], [], []>} : vector<8x256xbf16>, vector<256x256xbf16>, vector<8x256xf32> -> vector<8x256xf32>
    %5 = vector.broadcast %3 : vector<1x256xf32> to vector<8x256xf32>
    %6 = arith.addf %4, %5 : vector<8x256xf32>
    %cst_6 = arith.constant 0.000000e+00 : f32
    %7 = vector.broadcast %cst_6 : f32 to vector<8x256xf32>
    %8 = arith.maximumf %6, %7 : vector<8x256xf32>
    %9 = arith.truncf %8 : vector<8x256xf32> to vector<8x256xbf16>
    %c256 = arith.constant 256 : index
    %c0_7 = arith.constant 0 : index
    %10 = vector.load %arg2[%c256, %c0_7] : memref<2048x384xbf16, #tpu.memory_space<vmem>>, vector<256x256xbf16>
    %c1 = arith.constant 1 : index
    %c0_8 = arith.constant 0 : index
    %c0_9 = arith.constant 0 : index
    %11 = vector.load %arg3[%c1, %c0_8, %c0_9] : memref<9x1x384xf32, #tpu.memory_space<vmem>>, vector<1x1x256xf32>
    %12 = vector.shape_cast %11 : vector<1x1x256xf32> to vector<1x256xf32>
    %cst_10 = arith.constant dense<0.000000e+00> : vector<8x256xf32>
    %13 = tpu.matmul %9, %10, %cst_10 {dimension_numbers = #tpu.dot_dimension_numbers<[1], [0], [0], [1], [0, 0, 1, 1], [], []>} : vector<8x256xbf16>, vector<256x256xbf16>, vector<8x256xf32> -> vector<8x256xf32>
    %14 = vector.broadcast %12 : vector<1x256xf32> to vector<8x256xf32>
    %15 = arith.addf %13, %14 : vector<8x256xf32>
    %cst_11 = arith.constant 0.000000e+00 : f32
    %16 = vector.broadcast %cst_11 : f32 to vector<8x256xf32>
    %17 = arith.maximumf %15, %16 : vector<8x256xf32>
    %18 = arith.truncf %17 : vector<8x256xf32> to vector<8x256xbf16>
    %c512 = arith.constant 512 : index
    %c0_12 = arith.constant 0 : index
    %19 = vector.load %arg2[%c512, %c0_12] : memref<2048x384xbf16, #tpu.memory_space<vmem>>, vector<256x384xbf16>
    %c2 = arith.constant 2 : index
    %c0_13 = arith.constant 0 : index
    %c0_14 = arith.constant 0 : index
    %20 = vector.load %arg3[%c2, %c0_13, %c0_14] : memref<9x1x384xf32, #tpu.memory_space<vmem>>, vector<1x1x384xf32>
    %21 = vector.shape_cast %20 : vector<1x1x384xf32> to vector<1x384xf32>
    %cst_15 = arith.constant dense<0.000000e+00> : vector<8x384xf32>
    %22 = tpu.matmul %18, %19, %cst_15 {dimension_numbers = #tpu.dot_dimension_numbers<[1], [0], [0], [1], [0, 0, 1, 1], [], []>} : vector<8x256xbf16>, vector<256x384xbf16>, vector<8x384xf32> -> vector<8x384xf32>
    %23 = vector.broadcast %21 : vector<1x384xf32> to vector<8x384xf32>
    %24 = arith.addf %22, %23 : vector<8x384xf32>
    %cst_16 = arith.constant 0.000000e+00 : f32
    %25 = vector.broadcast %cst_16 : f32 to vector<8x384xf32>
    %26 = arith.maximumf %24, %25 : vector<8x384xf32>
    %27 = arith.truncf %26 : vector<8x384xf32> to vector<8x384xbf16>
    %c768 = arith.constant 768 : index
    %c0_17 = arith.constant 0 : index
    %28 = vector.load %arg2[%c768, %c0_17] : memref<2048x384xbf16, #tpu.memory_space<vmem>>, vector<384x256xbf16>
    %c3 = arith.constant 3 : index
    %c0_18 = arith.constant 0 : index
    %c0_19 = arith.constant 0 : index
    %29 = vector.load %arg3[%c3, %c0_18, %c0_19] : memref<9x1x384xf32, #tpu.memory_space<vmem>>, vector<1x1x256xf32>
    %30 = vector.shape_cast %29 : vector<1x1x256xf32> to vector<1x256xf32>
    %cst_20 = arith.constant dense<0.000000e+00> : vector<8x256xf32>
    %31 = tpu.matmul %27, %28, %cst_20 {dimension_numbers = #tpu.dot_dimension_numbers<[1], [0], [0], [1], [0, 0, 1, 1], [], []>} : vector<8x384xbf16>, vector<384x256xbf16>, vector<8x256xf32> -> vector<8x256xf32>
    %32 = vector.broadcast %30 : vector<1x256xf32> to vector<8x256xf32>
    %33 = arith.addf %31, %32 : vector<8x256xf32>
    %cst_21 = arith.constant 0.000000e+00 : f32
    %34 = vector.broadcast %cst_21 : f32 to vector<8x256xf32>
    %35 = arith.maximumf %33, %34 : vector<8x256xf32>
    %36 = arith.truncf %35 : vector<8x256xf32> to vector<8x256xbf16>
    %c1152 = arith.constant 1152 : index
    %c0_22 = arith.constant 0 : index
    %37 = vector.load %arg2[%c1152, %c0_22] : memref<2048x384xbf16, #tpu.memory_space<vmem>>, vector<256x256xbf16>
    %c4 = arith.constant 4 : index
    %c0_23 = arith.constant 0 : index
    %c0_24 = arith.constant 0 : index
    %38 = vector.load %arg3[%c4, %c0_23, %c0_24] : memref<9x1x384xf32, #tpu.memory_space<vmem>>, vector<1x1x256xf32>
    %39 = vector.shape_cast %38 : vector<1x1x256xf32> to vector<1x256xf32>
    %cst_25 = arith.constant dense<0.000000e+00> : vector<8x256xf32>
    %40 = tpu.matmul %36, %37, %cst_25 {dimension_numbers = #tpu.dot_dimension_numbers<[1], [0], [0], [1], [0, 0, 1, 1], [], []>} : vector<8x256xbf16>, vector<256x256xbf16>, vector<8x256xf32> -> vector<8x256xf32>
    %41 = vector.broadcast %39 : vector<1x256xf32> to vector<8x256xf32>
    %42 = arith.addf %40, %41 : vector<8x256xf32>
    %cst_26 = arith.constant 0.000000e+00 : f32
    %43 = vector.broadcast %cst_26 : f32 to vector<8x256xf32>
    %44 = arith.maximumf %42, %43 : vector<8x256xf32>
    %45 = arith.truncf %44 : vector<8x256xf32> to vector<8x256xbf16>
    %c1408 = arith.constant 1408 : index
    %c0_27 = arith.constant 0 : index
    %46 = vector.load %arg2[%c1408, %c0_27] : memref<2048x384xbf16, #tpu.memory_space<vmem>>, vector<256x128xbf16>
    %c5 = arith.constant 5 : index
    %c0_28 = arith.constant 0 : index
    %c0_29 = arith.constant 0 : index
    %47 = vector.load %arg3[%c5, %c0_28, %c0_29] : memref<9x1x384xf32, #tpu.memory_space<vmem>>, vector<1x1x128xf32>
    %48 = vector.shape_cast %47 : vector<1x1x128xf32> to vector<1x128xf32>
    %cst_30 = arith.constant dense<0.000000e+00> : vector<8x128xf32>
    %49 = tpu.matmul %45, %46, %cst_30 {dimension_numbers = #tpu.dot_dimension_numbers<[1], [0], [0], [1], [0, 0, 1, 1], [], []>} : vector<8x256xbf16>, vector<256x128xbf16>, vector<8x128xf32> -> vector<8x128xf32>
    %50 = vector.broadcast %48 : vector<1x128xf32> to vector<8x128xf32>
    %51 = arith.addf %49, %50 : vector<8x128xf32>
    %cst_31 = arith.constant 0.000000e+00 : f32
    %52 = vector.broadcast %cst_31 : f32 to vector<8x128xf32>
    %53 = arith.maximumf %51, %52 : vector<8x128xf32>
    %54 = arith.truncf %53 : vector<8x128xf32> to vector<8x128xbf16>
    %c1664 = arith.constant 1664 : index
    %c0_32 = arith.constant 0 : index
    %55 = vector.load %arg2[%c1664, %c0_32] : memref<2048x384xbf16, #tpu.memory_space<vmem>>, vector<128x128xbf16>
    %c6 = arith.constant 6 : index
    %c0_33 = arith.constant 0 : index
    %c0_34 = arith.constant 0 : index
    %56 = vector.load %arg3[%c6, %c0_33, %c0_34] : memref<9x1x384xf32, #tpu.memory_space<vmem>>, vector<1x1x128xf32>
    %57 = vector.shape_cast %56 : vector<1x1x128xf32> to vector<1x128xf32>
    %cst_35 = arith.constant dense<0.000000e+00> : vector<8x128xf32>
    %58 = tpu.matmul %54, %55, %cst_35 {dimension_numbers = #tpu.dot_dimension_numbers<[1], [0], [0], [1], [0, 0, 1, 1], [], []>} : vector<8x128xbf16>, vector<128x128xbf16>, vector<8x128xf32> -> vector<8x128xf32>
    %59 = vector.broadcast %57 : vector<1x128xf32> to vector<8x128xf32>
    %60 = arith.addf %58, %59 : vector<8x128xf32>
    %cst_36 = arith.constant 0.000000e+00 : f32
    %61 = vector.broadcast %cst_36 : f32 to vector<8x128xf32>
    %62 = arith.maximumf %60, %61 : vector<8x128xf32>
    %63 = arith.truncf %62 : vector<8x128xf32> to vector<8x128xbf16>
    %c1792 = arith.constant 1792 : index
    %c0_37 = arith.constant 0 : index
    %64 = vector.load %arg2[%c1792, %c0_37] : memref<2048x384xbf16, #tpu.memory_space<vmem>>, vector<128x128xbf16>
    %c7 = arith.constant 7 : index
    %c0_38 = arith.constant 0 : index
    %c0_39 = arith.constant 0 : index
    %65 = vector.load %arg3[%c7, %c0_38, %c0_39] : memref<9x1x384xf32, #tpu.memory_space<vmem>>, vector<1x1x128xf32>
    %66 = vector.shape_cast %65 : vector<1x1x128xf32> to vector<1x128xf32>
    %cst_40 = arith.constant dense<0.000000e+00> : vector<8x128xf32>
    %67 = tpu.matmul %63, %64, %cst_40 {dimension_numbers = #tpu.dot_dimension_numbers<[1], [0], [0], [1], [0, 0, 1, 1], [], []>} : vector<8x128xbf16>, vector<128x128xbf16>, vector<8x128xf32> -> vector<8x128xf32>
    %68 = vector.broadcast %66 : vector<1x128xf32> to vector<8x128xf32>
    %69 = arith.addf %67, %68 : vector<8x128xf32>
    %cst_41 = arith.constant 0.000000e+00 : f32
    %70 = vector.broadcast %cst_41 : f32 to vector<8x128xf32>
    %71 = arith.maximumf %69, %70 : vector<8x128xf32>
    %72 = arith.truncf %71 : vector<8x128xf32> to vector<8x128xbf16>
    %c1920 = arith.constant 1920 : index
    %c0_42 = arith.constant 0 : index
    %73 = vector.load %arg2[%c1920, %c0_42] : memref<2048x384xbf16, #tpu.memory_space<vmem>>, vector<128x128xbf16>
    %c8 = arith.constant 8 : index
    %c0_43 = arith.constant 0 : index
    %c0_44 = arith.constant 0 : index
    %74 = vector.load %arg3[%c8, %c0_43, %c0_44] : memref<9x1x384xf32, #tpu.memory_space<vmem>>, vector<1x1x128xf32>
    %75 = vector.shape_cast %74 : vector<1x1x128xf32> to vector<1x128xf32>
    %cst_45 = arith.constant dense<0.000000e+00> : vector<8x128xf32>
    %76 = tpu.matmul %72, %73, %cst_45 {dimension_numbers = #tpu.dot_dimension_numbers<[1], [0], [0], [1], [0, 0, 1, 1], [], []>} : vector<8x128xbf16>, vector<128x128xbf16>, vector<8x128xf32> -> vector<8x128xf32>
    %77 = vector.broadcast %75 : vector<1x128xf32> to vector<8x128xf32>
    %78 = arith.addf %76, %77 : vector<8x128xf32>
    %79 = tpu.iota {dimensions = array<i32: 1>} : vector<8x128xi32>
    %c10_i32 = arith.constant 10 : i32
    %80 = vector.broadcast %c10_i32 : i32 to vector<8x128xi32>
    %81 = arith.cmpi slt, %79, %80 : vector<8x128xi32>
    %cst_46 = arith.constant 0xFF800000 : f32
    %82 = vector.broadcast %cst_46 : f32 to vector<8x128xf32>
    %83 = arith.select %81, %78, %82 : vector<8x128xi1>, vector<8x128xf32>
    %cst_47 = arith.constant dense<0xFF800000> : vector<8xf32>
    %84 = vector.multi_reduction <maximumf>, %83, %cst_47 [1] : vector<8x128xf32> to vector<8xf32>
    %85 = vector.shape_cast %84 : vector<8xf32> to vector<8x1xf32>
    %86 = vector.broadcast %85 : vector<8x1xf32> to vector<8x128xf32>
    %87 = arith.subf %83, %86 : vector<8x128xf32>
    %88 = math.exp %87 : vector<8x128xf32>
    %cst_48 = arith.constant dense<0.000000e+00> : vector<8xf32>
    %89 = vector.multi_reduction <add>, %88, %cst_48 [1] : vector<8x128xf32> to vector<8xf32>
    %90 = vector.shape_cast %89 : vector<8xf32> to vector<8x1xf32>
    %91 = tpu.reciprocal %90 {approx = true} : vector<8x1xf32> -> vector<8x1xf32>
    %92 = vector.broadcast %91 : vector<8x1xf32> to vector<8x128xf32>
    %93 = arith.mulf %88, %92 : vector<8x128xf32>
    %c0_49 = arith.constant 0 : index
    %c0_50 = arith.constant 0 : index
    %94 = vector.load %arg4[%c0_49, %c0_50] : memref<8x128xf32, #tpu.memory_space<vmem>>, vector<8x128xf32>
    tpu.vector_store %arg4[%c0_49, %c0_50], %93 {strides = array<i32>} : memref<8x128xf32, #tpu.memory_space<vmem>>, vector<8x128xf32>,
    return
  }
  func.func @transform_0(%arg0: i32) -> (i32, i32) {
    %c0_i32 = arith.constant 0 : i32
    %c0_i32_0 = arith.constant 0 : i32
    return %arg0, %c0_i32 : i32, i32
  }
  func.func @transform_1(%arg0: i32) -> (i32, i32) {
    %c0_i32 = arith.constant 0 : i32
    %c0_i32_0 = arith.constant 0 : i32
    %c0_i32_1 = arith.constant 0 : i32
    return %c0_i32, %c0_i32_0 : i32, i32
  }
  func.func @transform_2(%arg0: i32) -> (i32, i32, i32) {
    %c0_i32 = arith.constant 0 : i32
    %c0_i32_0 = arith.constant 0 : i32
    %c0_i32_1 = arith.constant 0 : i32
    %c0_i32_2 = arith.constant 0 : i32
    return %c0_i32, %c0_i32_0, %c0_i32_1 : i32, i32, i32
  }
  func.func @transform_3(%arg0: i32) -> (i32, i32) {
    %c0_i32 = arith.constant 0 : i32
    %c0_i32_0 = arith.constant 0 : i32
    return %arg0, %c0_i32 : i32, i32
  }
}

</mosaic_0001>

<llo_original>
// kernel: net_forward.1
$region0: #{net_forward.1}
  #allocation0 [shape = 'u32[]', space=smem, size = 0x4, offset = 0x4, fixed_abs, tag = 'smem constant byte address 0x4 - core index']
  #allocation1 [shape = 'u32[144,128]{1,0:T(1,128)}', space=vmem, size = 0x12000, scoped, tag = 'internal scratch']
  %s0 = inlined_call_operand.vmem [shape: bf16[8,256], index: 0, kind: input, shape index: {}]
  %s1 = inlined_call_operand.hbm [shape: bf16[2048,384], index: 1, kind: input, shape index: {}]
  %s2 = inlined_call_operand.hbm [shape: f32[9,1,384], index: 2, kind: input, shape index: {}]
  %s3 = inlined_call_operand.vmem [shape: f32[8,128], index: 3, kind: output, shape index: {}]
  %s4 = sld [smem:[#allocation0]]
  $region30: #{net_forward.1} parent=0
    _
  %s6 = ssub.s32 1, %s4
  %s7 = scalar_select 0, %s6, %s4
  $region1: #{net_forward.1} parent=0
    #allocation2 [shape = 'u8[1572864]{0}', space=vmem, size = 0x180000, scoped, tag = 'input window, operand 1, single buffered']
    #allocation3 [shape = 's32[1]{0}', space=sflag, size = 0x4, scoped, tag = 'scoped memory for net_forward.1']
    #allocation4 [shape = 'u8[13824]{0}', space=vmem, size = 0x3800, scoped, tag = 'input window, operand 2, single buffered']
    #allocation5 [shape = 's32[1]{0}', space=sflag, size = 0x4, scoped, tag = 'scoped memory for net_forward.1']
    %8 = vsyncpa [#allocation3], 0
    %9 = vsyncpa [#allocation5], 0
    // Predicated region
    $region2: #{net_forward.1} parent=1 // pred_check
      _
    $region3: #{net_forward.1} parent=1 // pred_check_branch
      %11 = sbr.rel (0) target = $region5
    $region4: #{net_forward.1} parent=1 // pred_region
      _
    $region5: #{net_forward.1} parent=1 // pred_fallthru
      _
    // Predicated region
    $region6: #{net_forward.1} parent=1 // pred_check
      _
    $region7: #{net_forward.1} parent=1 // pred_check_branch
      %13 = sbr.rel (0) target = $region9
    $region8: #{net_forward.1} parent=1 // pred_region
      %s15 = ssub.s32 49152, 49152
      %16 = vsyncadd [#allocation3], %s15
      %s17 = sshll.u32 [#allocation2], 4
      %s18 = int_to_ptr.vmem [resolvable:$true] %s17
      %23 = dma.hbm_to_vmem [thread:$0]  %s1, 49152, %s18, [#allocation3], 192, 192, 12
    $region9: #{net_forward.1} parent=1 // pred_fallthru
      _
    // Predicated region
    $region10: #{net_forward.1} parent=1 // pred_check
      _
    $region11: #{net_forward.1} parent=1 // pred_check_branch
      %25 = sbr.rel (0) target = $region13
    $region12: #{net_forward.1} parent=1 // pred_region
      %s27 = ssub.s32 432, 432
      %28 = vsyncadd [#allocation5], %s27
      %s29 = sshll.u32 [#allocation4], 4
      %s30 = int_to_ptr.vmem [resolvable:$true] %s29
      %35 = dma.hbm_to_vmem [thread:$0]  %s2, 432, %s30, [#allocation5], 48, 48, 3
    $region13: #{net_forward.1} parent=1 // pred_fallthru
      _
    // Predicated region
    $region14: #{net_forward.1} parent=1 // pred_check
      _
    $region15: #{net_forward.1} parent=1 // pred_check_branch
      %37 = sbr.rel (0) target = $region17
    $region16: #{net_forward.1} parent=1 // pred_region
      %38 = dma.done [#allocation3], 49152
    $region17: #{net_forward.1} parent=1 // pred_fallthru
      _
    // Predicated region
    $region18: #{net_forward.1} parent=1 // pred_check
      _
    $region19: #{net_forward.1} parent=1 // pred_check_branch
      %40 = sbr.rel (0) target = $region21
    $region20: #{net_forward.1} parent=1 // pred_region
      %41 = dma.done [#allocation5], 432
    $region21: #{net_forward.1} parent=1 // pred_fallthru
      _
    %v43 = vld [vmem:[%s0] sm:$0xff]
    %v44 = vld [vmem:[#allocation2] sm:$0xff]
    %v45 = vld [vmem:[#allocation2 + $0xc] sm:$0xff]
    %v46 = vld [vmem:[#allocation2 + $0x18] sm:$0xff]
    %v47 = vld [vmem:[#allocation2 + $0x24] sm:$0xff]
    %v48 = vld [vmem:[#allocation2 + $0x30] sm:$0xff]
    %v49 = vld [vmem:[#allocation2 + $0x3c] sm:$0xff]
    %v50 = vld [vmem:[#allocation2 + $0x48] sm:$0xff]
    %v51 = vld [vmem:[#allocation2 + $0x54] sm:$0xff]
    %v52 = vld [vmem:[#allocation2 + $0x60] sm:$0xff]
    %v53 = vld [vmem:[#allocation2 + $0x6c] sm:$0xff]
    %v54 = vld [vmem:[#allocation2 + $0x78] sm:$0xff]
    %v55 = vld [vmem:[#allocation2 + $0x84] sm:$0xff]
    %v56 = vld [vmem:[#allocation2 + $0x90] sm:$0xff]
    %v57 = vld [vmem:[#allocation2 + $0x9c] sm:$0xff]
    %v58 = vld [vmem:[#allocation2 + $0xa8] sm:$0xff]
    %v59 = vld [vmem:[#allocation2 + $0xb4] sm:$0xff]
    %v60 = vld [vmem:[#allocation2 + $0xc0] sm:$0xff]
    %v61 = vld [vmem:[#allocation2 + $0xcc] sm:$0xff]
    %v62 = vld [vmem:[#allocation2 + $0xd8] sm:$0xff]
    %v63 = vld [vmem:[#allocation2 + $0xe4] sm:$0xff]
    %v64 = vld [vmem:[#allocation2 + $0xf0] sm:$0xff]
    %v65 = vld [vmem:[#allocation2 + $0xfc] sm:$0xff]
    %v66 = vld [vmem:[#allocation2 + $0x108] sm:$0xff]
    %v67 = vld [vmem:[#allocation2 + $0x114] sm:$0xff]
    %v68 = vld [vmem:[#allocation2 + $0x120] sm:$0xff]
    %v69 = vld [vmem:[#allocation2 + $0x12c] sm:$0xff]
    %v70 = vld [vmem:[#allocation2 + $0x138] sm:$0xff]
    %v71 = vld [vmem:[#allocation2 + $0x144] sm:$0xff]
    %v72 = vld [vmem:[#allocation2 + $0x150] sm:$0xff]
    %v73 = vld [vmem:[#allocation2 + $0x15c] sm:$0xff]
    %v74 = vld [vmem:[#allocation2 + $0x168] sm:$0xff]
    %v75 = vld [vmem:[#allocation2 + $0x174] sm:$0xff]
    %v76 = vld [vmem:[#allocation4] sm:$0x3]
    %v78 = vlaneseq
    %v79 = vshrl.u32 %v78, 7
    %v80 = vsub.s32 0, %v79
    %v81 = vrot.slane %v76, %v80
    %v82 = vlaneseq
    %v83 = vshrl.u32 %v82, 7
    %v84 = vsub.s32 1, %v83
    %v85 = vrot.slane %v76, %v84
    %v89 = vunpack.c.l.b16 %v43
    %v90 = vunpack.c.h.b16 %v43
    %v91 = vpack.c.b16 %v89, %v89
    %v92 = vpack.c.b16 %v90, %v90
    %v127 = vunpack.c.l.b16 %v44
    %v128 = vunpack.c.h.b16 %v44
    %v129 = vunpack.c.l.b16 %v45
    %v130 = vunpack.c.h.b16 %v45
    %v131 = vunpack.c.l.b16 %v46
    %v132 = vunpack.c.h.b16 %v46
    %v133 = vunpack.c.l.b16 %v47
    %v134 = vunpack.c.h.b16 %v47
    %v135 = vunpack.c.l.b16 %v48
    %v136 = vunpack.c.h.b16 %v48
    %v137 = vunpack.c.l.b16 %v49
    %v138 = vunpack.c.h.b16 %v49
    %v139 = vunpack.c.l.b16 %v50
    %v140 = vunpack.c.h.b16 %v50
    %v141 = vunpack.c.l.b16 %v51
    %v142 = vunpack.c.h.b16 %v51
    %v143 = vunpack.c.l.b16 %v52
    %v144 = vunpack.c.h.b16 %v52
    %v145 = vunpack.c.l.b16 %v53
    %v146 = vunpack.c.h.b16 %v53
    %v147 = vunpack.c.l.b16 %v54
    %v148 = vunpack.c.h.b16 %v54
    %v149 = vunpack.c.l.b16 %v55
    %v150 = vunpack.c.h.b16 %v55
    %v151 = vunpack.c.l.b16 %v56
    %v152 = vunpack.c.h.b16 %v56
    %v153 = vunpack.c.l.b16 %v57
    %v154 = vunpack.c.h.b16 %v57
    %v155 = vunpack.c.l.b16 %v58
    %v156 = vunpack.c.h.b16 %v58
    %v157 = vunpack.c.l.b16 %v59
    %v158 = vunpack.c.h.b16 %v59
    %v159 = vunpack.c.l.b16 %v60
    %v160 = vunpack.c.h.b16 %v60
    %v161 = vunpack.c.l.b16 %v61
    %v162 = vunpack.c.h.b16 %v61
    %v163 = vunpack.c.l.b16 %v62
    %v164 = vunpack.c.h.b16 %v62
    %v165 = vunpack.c.l.b16 %v63
    %v166 = vunpack.c.h.b16 %v63
    %v167 = vunpack.c.l.b16 %v64
    %v168 = vunpack.c.h.b16 %v64
    %v169 = vunpack.c.l.b16 %v65
    %v170 = vunpack.c.h.b16 %v65
    %v171 = vunpack.c.l.b16 %v66
    %v172 = vunpack.c.h.b16 %v66
    %v173 = vunpack.c.l.b16 %v67
    %v174 = vunpack.c.h.b16 %v67
    %v175 = vunpack.c.l.b16 %v68
    %v176 = vunpack.c.h.b16 %v68
    %v177 = vunpack.c.l.b16 %v69
    %v178 = vunpack.c.h.b16 %v69
    %v179 = vunpack.c.l.b16 %v70
    %v180 = vunpack.c.h.b16 %v70
    %v181 = vunpack.c.l.b16 %v71
    %v182 = vunpack.c.h.b16 %v71
    %v183 = vunpack.c.l.b16 %v72
    %v184 = vunpack.c.h.b16 %v72
    %v185 = vunpack.c.l.b16 %v73
    %v186 = vunpack.c.h.b16 %v73
    %v187 = vunpack.c.l.b16 %v74
    %v188 = vunpack.c.h.b16 %v74
    %v189 = vunpack.c.l.b16 %v75
    %v190 = vunpack.c.h.b16 %v75
    %v191 = vpack.c.b16 %v129, %v127
    %v192 = vpack.c.b16 %v130, %v128
    %v193 = vpack.c.b16 %v133, %v131
    %v194 = vpack.c.b16 %v134, %v132
    %v195 = vpack.c.b16 %v137, %v135
    %v196 = vpack.c.b16 %v138, %v136
    %v197 = vpack.c.b16 %v141, %v139
    %v198 = vpack.c.b16 %v142, %v140
    %v199 = vpack.c.b16 %v145, %v143
    %v200 = vpack.c.b16 %v146, %v144
    %v201 = vpack.c.b16 %v149, %v147
    %v202 = vpack.c.b16 %v150, %v148
    %v203 = vpack.c.b16 %v153, %v151
    %v204 = vpack.c.b16 %v154, %v152
    %v205 = vpack.c.b16 %v157, %v155
    %v206 = vpack.c.b16 %v158, %v156
    %v207 = vpack.c.b16 %v161, %v159
    %v208 = vpack.c.b16 %v162, %v160
    %v209 = vpack.c.b16 %v165, %v163
    %v210 = vpack.c.b16 %v166, %v164
    %v211 = vpack.c.b16 %v169, %v167
    %v212 = vpack.c.b16 %v170, %v168
    %v213 = vpack.c.b16 %v173, %v171
    %v214 = vpack.c.b16 %v174, %v172
    %v215 = vpack.c.b16 %v177, %v175
    %v216 = vpack.c.b16 %v178, %v176
    %v217 = vpack.c.b16 %v181, %v179
    %v218 = vpack.c.b16 %v182, %v180
    %v219 = vpack.c.b16 %v185, %v183
    %v220 = vpack.c.b16 %v186, %v184
    %v221 = vpack.c.b16 %v189, %v187
    %v222 = vpack.c.b16 %v190, %v188
    %255 = vmatprep.subr.bf16.mxu0 %v206
    %256 = vmatpush1.bf16.msra.mxu0 %v205
    %257 = vmatprep.subr.bf16.mxu0 %v204
    %258 = vmatpush1.bf16.msra.mxu0 %v203
    %259 = vmatprep.subr.bf16.mxu0 %v202
    %260 = vmatpush1.bf16.msra.mxu0 %v201
    %261 = vmatprep.subr.bf16.mxu0 %v200
    %262 = vmatpush1.bf16.msra.mxu0 %v199
    %263 = vmatprep.subr.bf16.mxu0 %v198
    %264 = vmatpush1.bf16.msra.mxu0 %v197
    %265 = vmatprep.subr.bf16.mxu0 %v196
    %266 = vmatpush1.bf16.msra.mxu0 %v195
    %267 = vmatprep.subr.bf16.mxu0 %v194
    %268 = vmatpush1.bf16.msra.mxu0 %v193
    %269 = vmatprep.subr.bf16.mxu0 %v192
    %270 = vmatpush1.bf16.msra.mxu0 %v191
    %271 = vmatprep.subr.bf16.mxu0 %v222
    %272 = vmatpush2.bf16.msra.mxu0 %v221
    %273 = vmatprep.subr.bf16.mxu0 %v220
    %274 = vmatpush2.bf16.msra.mxu0 %v219
    %275 = vmatprep.subr.bf16.mxu0 %v218
    %276 = vmatpush2.bf16.msra.mxu0 %v217
    %277 = vmatprep.subr.bf16.mxu0 %v216
    %278 = vmatpush2.bf16.msra.mxu0 %v215
    %279 = vmatprep.subr.bf16.mxu0 %v214
    %280 = vmatpush2.bf16.msra.mxu0 %v213
    %281 = vmatprep.subr.bf16.mxu0 %v212
    %282 = vmatpush2.bf16.msra.mxu0 %v211
    %283 = vmatprep.subr.bf16.mxu0 %v210
    %284 = vmatpush2.bf16.msra.mxu0 %v209
    %285 = vmatprep.subr.bf16.mxu0 %v208
    %286 = vmatpush2.bf16.msra.mxu0 %v207
    %287 = vmatprep.mubr.bf16.mxu0 %v92
    %288 = vmatmul.mubr.bf16.gmra.mxu0 %v91
    %v289 = vpop.f32.mrf.mxu0
    %v290 = vadd.f32 %v81, %v289
    %v291 = vpop.f32.mrf.mxu0
    %v292 = vadd.f32 %v85, %v291
    %v293 = vpop.f32.mrf.mxu0
    %v294 = vpop.f32.mrf.mxu0
    %295 = vdwg.mxu0
    %v296 = vmax.f32 %v290, 0.0
    %v297 = vmax.f32 %v292, 0.0
    %v298 = vpack.c.bf16 %v296, %v296
    %v299 = vpack.c.bf16 %v297, %v297
    %v300 = vld [vmem:[#allocation2 + $0x180] sm:$0xff]
    %v301 = vld [vmem:[#allocation2 + $0x18c] sm:$0xff]
    %v302 = vld [vmem:[#allocation2 + $0x198] sm:$0xff]
    %v303 = vld [vmem:[#allocation2 + $0x1a4] sm:$0xff]
    %v304 = vld [vmem:[#allocation2 + $0x1b0] sm:$0xff]
    %v305 = vld [vmem:[#allocation2 + $0x1bc] sm:$0xff]
    %v306 = vld [vmem:[#allocation2 + $0x1c8] sm:$0xff]
    %v307 = vld [vmem:[#allocation2 + $0x1d4] sm:$0xff]
    %v308 = vld [vmem:[#allocation2 + $0x1e0] sm:$0xff]
    %v309 = vld [vmem:[#allocation2 + $0x1ec] sm:$0xff]
    %v310 = vld [vmem:[#allocation2 + $0x1f8] sm:$0xff]
    %v311 = vld [vmem:[#allocation2 + $0x204] sm:$0xff]
    %v312 = vld [vmem:[#allocation2 + $0x210] sm:$0xff]
    %v313 = vld [vmem:[#allocation2 + $0x21c] sm:$0xff]
    %v314 = vld [vmem:[#allocation2 + $0x228] sm:$0xff]
    %v315 = vld [vmem:[#allocation2 + $0x234] sm:$0xff]
    %v316 = vld [vmem:[#allocation2 + $0x240] sm:$0xff]
    %v317 = vld [vmem:[#allocation2 + $0x24c] sm:$0xff]
    %v318 = vld [vmem:[#allocation2 + $0x258] sm:$0xff]
    %v319 = vld [vmem:[#allocation2 + $0x264] sm:$0xff]
    %v320 = vld [vmem:[#allocation2 + $0x270] sm:$0xff]
    %v321 = vld [vmem:[#allocation2 + $0x27c] sm:$0xff]
    %v322 = vld [vmem:[#allocation2 + $0x288] sm:$0xff]
    %v323 = vld [vmem:[#allocation2 + $0x294] sm:$0xff]
    %v324 = vld [vmem:[#allocation2 + $0x2a0] sm:$0xff]
    %v325 = vld [vmem:[#allocation2 + $0x2ac] sm:$0xff]
    %v326 = vld [vmem:[#allocation2 + $0x2b8] sm:$0xff]
    %v327 = vld [vmem:[#allocation2 + $0x2c4] sm:$0xff]
    %v328 = vld [vmem:[#allocation2 + $0x2d0] sm:$0xff]
    %v329 = vld [vmem:[#allocation2 + $0x2dc] sm:$0xff]
    %v330 = vld [vmem:[#allocation2 + $0x2e8] sm:$0xff]
    %v331 = vld [vmem:[#allocation2 + $0x2f4] sm:$0xff]
    %s332 = scalar_lea.vmem [#allocation4], 3
    %v333 = vld [vmem:[%s332] sm:$0x3]
    %v335 = vlaneseq
    %v336 = vshrl.u32 %v335, 7
    %v337 = vsub.s32 0, %v336
    %v338 = vrot.slane %v333, %v337
    %v339 = vlaneseq
    %v340 = vshrl.u32 %v339, 7
    %v341 = vsub.s32 1, %v340
    %v342 = vrot.slane %v333, %v341
    %v377 = vunpack.c.l.b16 %v300
    %v378 = vunpack.c.h.b16 %v300
    %v379 = vunpack.c.l.b16 %v301
    %v380 = vunpack.c.h.b16 %v301
    %v381 = vunpack.c.l.b16 %v302
    %v382 = vunpack.c.h.b16 %v302
    %v383 = vunpack.c.l.b16 %v303
    %v384 = vunpack.c.h.b16 %v303
    %v385 = vunpack.c.l.b16 %v304
    %v386 = vunpack.c.h.b16 %v304
    %v387 = vunpack.c.l.b16 %v305
    %v388 = vunpack.c.h.b16 %v305
    %v389 = vunpack.c.l.b16 %v306
    %v390 = vunpack.c.h.b16 %v306
    %v391 = vunpack.c.l.b16 %v307
    %v392 = vunpack.c.h.b16 %v307
    %v393 = vunpack.c.l.b16 %v308
    %v394 = vunpack.c.h.b16 %v308
    %v395 = vunpack.c.l.b16 %v309
    %v396 = vunpack.c.h.b16 %v309
    %v397 = vunpack.c.l.b16 %v310
    %v398 = vunpack.c.h.b16 %v310
    %v399 = vunpack.c.l.b16 %v311
    %v400 = vunpack.c.h.b16 %v311
    %v401 = vunpack.c.l.b16 %v312
    %v402 = vunpack.c.h.b16 %v312
    %v403 = vunpack.c.l.b16 %v313
    %v404 = vunpack.c.h.b16 %v313
    %v405 = vunpack.c.l.b16 %v314
    %v406 = vunpack.c.h.b16 %v314
    %v407 = vunpack.c.l.b16 %v315
    %v408 = vunpack.c.h.b16 %v315
    %v409 = vunpack.c.l.b16 %v316
    %v410 = vunpack.c.h.b16 %v316
    %v411 = vunpack.c.l.b16 %v317
    %v412 = vunpack.c.h.b16 %v317
    %v413 = vunpack.c.l.b16 %v318
    %v414 = vunpack.c.h.b16 %v318
    %v415 = vunpack.c.l.b16 %v319
    %v416 = vunpack.c.h.b16 %v319
    %v417 = vunpack.c.l.b16 %v320
    %v418 = vunpack.c.h.b16 %v320
    %v419 = vunpack.c.l.b16 %v321
    %v420 = vunpack.c.h.b16 %v321
    %v421 = vunpack.c.l.b16 %v322
    %v422 = vunpack.c.h.b16 %v322
    %v423 = vunpack.c.l.b16 %v323
    %v424 = vunpack.c.h.b16 %v323
    %v425 = vunpack.c.l.b16 %v324
    %v426 = vunpack.c.h.b16 %v324
    %v427 = vunpack.c.l.b16 %v325
    %v428 = vunpack.c.h.b16 %v325
    %v429 = vunpack.c.l.b16 %v326
    %v430 = vunpack.c.h.b16 %v326
    %v431 = vunpack.c.l.b16 %v327
    %v432 = vunpack.c.h.b16 %v327
    %v433 = vunpack.c.l.b16 %v328
    %v434 = vunpack.c.h.b16 %v328
    %v435 = vunpack.c.l.b16 %v329
    %v436 = vunpack.c.h.b16 %v329
    %v437 = vunpack.c.l.b16 %v330
    %v438 = vunpack.c.h.b16 %v330
    %v439 = vunpack.c.l.b16 %v331
    %v440 = vunpack.c.h.b16 %v331
    %v441 = vpack.c.b16 %v379, %v377
    %v442 = vpack.c.b16 %v380, %v378
    %v443 = vpack.c.b16 %v383, %v381
    %v444 = vpack.c.b16 %v384, %v382
    %v445 = vpack.c.b16 %v387, %v385
    %v446 = vpack.c.b16 %v388, %v386
    %v447 = vpack.c.b16 %v391, %v389
    %v448 = vpack.c.b16 %v392, %v390
    %v449 = vpack.c.b16 %v395, %v393
    %v450 = vpack.c.b16 %v396, %v394
    %v451 = vpack.c.b16 %v399, %v397
    %v452 = vpack.c.b16 %v400, %v398
    %v453 = vpack.c.b16 %v403, %v401
    %v454 = vpack.c.b16 %v404, %v402
    %v455 = vpack.c.b16 %v407, %v405
    %v456 = vpack.c.b16 %v408, %v406
    %v457 = vpack.c.b16 %v411, %v409
    %v458 = vpack.c.b16 %v412, %v410
    %v459 = vpack.c.b16 %v415, %v413
    %v460 = vpack.c.b16 %v416, %v414
    %v461 = vpack.c.b16 %v419, %v417
    %v462 = vpack.c.b16 %v420, %v418
    %v463 = vpack.c.b16 %v423, %v421
    %v464 = vpack.c.b16 %v424, %v422
    %v465 = vpack.c.b16 %v427, %v425
    %v466 = vpack.c.b16 %v428, %v426
    %v467 = vpack.c.b16 %v431, %v429
    %v468 = vpack.c.b16 %v432, %v430
    %v469 = vpack.c.b16 %v435, %v433
    %v470 = vpack.c.b16 %v436, %v434
    %v471 = vpack.c.b16 %v439, %v437
    %v472 = vpack.c.b16 %v440, %v438
    %505 = vmatprep.subr.bf16.mxu0 %v456
    %506 = vmatpush1.bf16.msra.mxu0 %v455
    %507 = vmatprep.subr.bf16.mxu0 %v454
    %508 = vmatpush1.bf16.msra.mxu0 %v453
    %509 = vmatprep.subr.bf16.mxu0 %v452
    %510 = vmatpush1.bf16.msra.mxu0 %v451
    %511 = vmatprep.subr.bf16.mxu0 %v450
    %512 = vmatpush1.bf16.msra.mxu0 %v449
    %513 = vmatprep.subr.bf16.mxu0 %v448
    %514 = vmatpush1.bf16.msra.mxu0 %v447
    %515 = vmatprep.subr.bf16.mxu0 %v446
    %516 = vmatpush1.bf16.msra.mxu0 %v445
    %517 = vmatprep.subr.bf16.mxu0 %v444
    %518 = vmatpush1.bf16.msra.mxu0 %v443
    %519 = vmatprep.subr.bf16.mxu0 %v442
    %520 = vmatpush1.bf16.msra.mxu0 %v441
    %521 = vmatprep.subr.bf16.mxu0 %v472
    %522 = vmatpush2.bf16.msra.mxu0 %v471
    %523 = vmatprep.subr.bf16.mxu0 %v470
    %524 = vmatpush2.bf16.msra.mxu0 %v469
    %525 = vmatprep.subr.bf16.mxu0 %v468
    %526 = vmatpush2.bf16.msra.mxu0 %v467
    %527 = vmatprep.subr.bf16.mxu0 %v466
    %528 = vmatpush2.bf16.msra.mxu0 %v465
    %529 = vmatprep.subr.bf16.mxu0 %v464
    %530 = vmatpush2.bf16.msra.mxu0 %v463
    %531 = vmatprep.subr.bf16.mxu0 %v462
    %532 = vmatpush2.bf16.msra.mxu0 %v461
    %533 = vmatprep.subr.bf16.mxu0 %v460
    %534 = vmatpush2.bf16.msra.mxu0 %v459
    %535 = vmatprep.subr.bf16.mxu0 %v458
    %536 = vmatpush2.bf16.msra.mxu0 %v457
    %537 = vmatprep.mubr.bf16.mxu0 %v299
    %538 = vmatmul.mubr.bf16.gmra.mxu0 %v298
    %v539 = vpop.f32.mrf.mxu0
    %v540 = vadd.f32 %v338, %v539
    %v541 = vpop.f32.mrf.mxu0
    %v542 = vadd.f32 %v342, %v541
    %v543 = vpop.f32.mrf.mxu0
    %v544 = vpop.f32.mrf.mxu0
    %545 = vdwg.mxu0
    %v546 = vmax.f32 %v540, 0.0
    %v547 = vmax.f32 %v542, 0.0
    %v548 = vpack.c.bf16 %v546, %v546
    %v549 = vpack.c.bf16 %v547, %v547
    %v550 = vld [vmem:[#allocation2 + $0x300] sm:$0xff]
    %v551 = vld [vmem:[#allocation2 + $0x308] sm:$0xf]
    %v552 = vld [vmem:[#allocation2 + $0x30c] sm:$0xff]
    %v553 = vld [vmem:[#allocation2 + $0x314] sm:$0xf]
    %v554 = vld [vmem:[#allocation2 + $0x318] sm:$0xff]
    %v555 = vld [vmem:[#allocation2 + $0x320] sm:$0xf]
    %v556 = vld [vmem:[#allocation2 + $0x324] sm:$0xff]
    %v557 = vld [vmem:[#allocation2 + $0x32c] sm:$0xf]
    %v558 = vld [vmem:[#allocation2 + $0x330] sm:$0xff]
    %v559 = vld [vmem:[#allocation2 + $0x338] sm:$0xf]
    %v560 = vld [vmem:[#allocation2 + $0x33c] sm:$0xff]
    %v561 = vld [vmem:[#allocation2 + $0x344] sm:$0xf]
    %v562 = vld [vmem:[#allocation2 + $0x348] sm:$0xff]
    %v563 = vld [vmem:[#allocation2 + $0x350] sm:$0xf]
    %v564 = vld [vmem:[#allocation2 + $0x354] sm:$0xff]
    %v565 = vld [vmem:[#allocation2 + $0x35c] sm:$0xf]
    %v566 = vld [vmem:[#allocation2 + $0x360] sm:$0xff]
    %v567 = vld [vmem:[#allocation2 + $0x368] sm:$0xf]
    %v568 = vld [vmem:[#allocation2 + $0x36c] sm:$0xff]
    %v569 = vld [vmem:[#allocation2 + $0x374] sm:$0xf]
    %v570 = vld [vmem:[#allocation2 + $0x378] sm:$0xff]
    %v571 = vld [vmem:[#allocation2 + $0x380] sm:$0xf]
    %v572 = vld [vmem:[#allocation2 + $0x384] sm:$0xff]
    %v573 = vld [vmem:[#allocation2 + $0x38c] sm:$0xf]
    %v574 = vld [vmem:[#allocation2 + $0x390] sm:$0xff]
    %v575 = vld [vmem:[#allocation2 + $0x398] sm:$0xf]
    %v576 = vld [vmem:[#allocation2 + $0x39c] sm:$0xff]
    %v577 = vld [vmem:[#allocation2 + $0x3a4] sm:$0xf]
    %v578 = vld [vmem:[#allocation2 + $0x3a8] sm:$0xff]
    %v579 = vld [vmem:[#allocation2 + $0x3b0] sm:$0xf]
    %v580 = vld [vmem:[#allocation2 + $0x3b4] sm:$0xff]
    %v581 = vld [vmem:[#allocation2 + $0x3bc] sm:$0xf]
    %v582 = vld [vmem:[#allocation2 + $0x3c0] sm:$0xff]
    %v583 = vld [vmem:[#allocation2 + $0x3c8] sm:$0xf]
    %v584 = vld [vmem:[#allocation2 + $0x3cc] sm:$0xff]
    %v585 = vld [vmem:[#allocation2 + $0x3d4] sm:$0xf]
    %v586 = vld [vmem:[#allocation2 + $0x3d8] sm:$0xff]
    %v587 = vld [vmem:[#allocation2 + $0x3e0] sm:$0xf]
    %v588 = vld [vmem:[#allocation2 + $0x3e4] sm:$0xff]
    %v589 = vld [vmem:[#allocation2 + $0x3ec] sm:$0xf]
    %v590 = vld [vmem:[#allocation2 + $0x3f0] sm:$0xff]
    %v591 = vld [vmem:[#allocation2 + $0x3f8] sm:$0xf]
    %v592 = vld [vmem:[#allocation2 + $0x3fc] sm:$0xff]
    %v593 = vld [vmem:[#allocation2 + $0x404] sm:$0xf]
    %v594 = vld [vmem:[#allocation2 + $0x408] sm:$0xff]
    %v595 = vld [vmem:[#allocation2 + $0x410] sm:$0xf]
    %v596 = vld [vmem:[#allocation2 + $0x414] sm:$0xff]
    %v597 = vld [vmem:[#allocation2 + $0x41c] sm:$0xf]
    %v598 = vld [vmem:[#allocation2 + $0x420] sm:$0xff]
    %v599 = vld [vmem:[#allocation2 + $0x428] sm:$0xf]
    %v600 = vld [vmem:[#allocation2 + $0x42c] sm:$0xff]
    %v601 = vld [vmem:[#allocation2 + $0x434] sm:$0xf]
    %v602 = vld [vmem:[#allocation2 + $0x438] sm:$0xff]
    %v603 = vld [vmem:[#allocation2 + $0x440] sm:$0xf]
    %v604 = vld [vmem:[#allocation2 + $0x444] sm:$0xff]
    %v605 = vld [vmem:[#allocation2 + $0x44c] sm:$0xf]
    %v606 = vld [vmem:[#allocation2 + $0x450] sm:$0xff]
    %v607 = vld [vmem:[#allocation2 + $0x458] sm:$0xf]
    %v608 = vld [vmem:[#allocation2 + $0x45c] sm:$0xff]
    %v609 = vld [vmem:[#allocation2 + $0x464] sm:$0xf]
    %v610 = vld [vmem:[#allocation2 + $0x468] sm:$0xff]
    %v611 = vld [vmem:[#allocation2 + $0x470] sm:$0xf]
    %v612 = vld [vmem:[#allocation2 + $0x474] sm:$0xff]
    %v613 = vld [vmem:[#allocation2 + $0x47c] sm:$0xf]
    %s614 = scalar_lea.vmem [#allocation4], 6
    %v615 = vld [vmem:[%s614] sm:$0x7]
    %v617 = vlaneseq
    %v618 = vshrl.u32 %v617, 7
    %v619 = vsub.s32 0, %v618
    %v620 = vrot.slane %v615, %v619
    %v621 = vlaneseq
    %v622 = vshrl.u32 %v621, 7
    %v623 = vsub.s32 1, %v622
    %v624 = vrot.slane %v615, %v623
    %v625 = vlaneseq
    %v626 = vshrl.u32 %v625, 7
    %v627 = vsub.s32 2, %v626
    %v628 = vrot.slane %v615, %v627
    %v696 = vunpack.c.l.b16 %v550
    %v697 = vunpack.c.h.b16 %v550
    %v698 = vunpack.c.l.b16 %v551
    %v699 = vunpack.c.l.b16 %v552
    %v700 = vunpack.c.h.b16 %v552
    %v701 = vunpack.c.l.b16 %v553
    %v702 = vunpack.c.l.b16 %v554
    %v703 = vunpack.c.h.b16 %v554
    %v704 = vunpack.c.l.b16 %v555
    %v705 = vunpack.c.l.b16 %v556
    %v706 = vunpack.c.h.b16 %v556
    %v707 = vunpack.c.l.b16 %v557
    %v708 = vunpack.c.l.b16 %v558
    %v709 = vunpack.c.h.b16 %v558
    %v710 = vunpack.c.l.b16 %v559
    %v711 = vunpack.c.l.b16 %v560
    %v712 = vunpack.c.h.b16 %v560
    %v713 = vunpack.c.l.b16 %v561
    %v714 = vunpack.c.l.b16 %v562
    %v715 = vunpack.c.h.b16 %v562
    %v716 = vunpack.c.l.b16 %v563
    %v717 = vunpack.c.l.b16 %v564
    %v718 = vunpack.c.h.b16 %v564
    %v719 = vunpack.c.l.b16 %v565
    %v720 = vunpack.c.l.b16 %v566
    %v721 = vunpack.c.h.b16 %v566
    %v722 = vunpack.c.l.b16 %v567
    %v723 = vunpack.c.l.b16 %v568
    %v724 = vunpack.c.h.b16 %v568
    %v725 = vunpack.c.l.b16 %v569
    %v726 = vunpack.c.l.b16 %v570
    %v727 = vunpack.c.h.b16 %v570
    %v728 = vunpack.c.l.b16 %v571
    %v729 = vunpack.c.l.b16 %v572
    %v730 = vunpack.c.h.b16 %v572
    %v731 = vunpack.c.l.b16 %v573
    %v732 = vunpack.c.l.b16 %v574
    %v733 = vunpack.c.h.b16 %v574
    %v734 = vunpack.c.l.b16 %v575
    %v735 = vunpack.c.l.b16 %v576
    %v736 = vunpack.c.h.b16 %v576
    %v737 = vunpack.c.l.b16 %v577
    %v738 = vunpack.c.l.b16 %v578
    %v739 = vunpack.c.h.b16 %v578
    %v740 = vunpack.c.l.b16 %v579
    %v741 = vunpack.c.l.b16 %v580
    %v742 = vunpack.c.h.b16 %v580
    %v743 = vunpack.c.l.b16 %v581
    %v744 = vunpack.c.l.b16 %v582
    %v745 = vunpack.c.h.b16 %v582
    %v746 = vunpack.c.l.b16 %v583
    %v747 = vunpack.c.l.b16 %v584
    %v748 = vunpack.c.h.b16 %v584
    %v749 = vunpack.c.l.b16 %v585
    %v750 = vunpack.c.l.b16 %v586
    %v751 = vunpack.c.h.b16 %v586
    %v752 = vunpack.c.l.b16 %v587
    %v753 = vunpack.c.l.b16 %v588
    %v754 = vunpack.c.h.b16 %v588
    %v755 = vunpack.c.l.b16 %v589
    %v756 = vunpack.c.l.b16 %v590
    %v757 = vunpack.c.h.b16 %v590
    %v758 = vunpack.c.l.b16 %v591
    %v759 = vunpack.c.l.b16 %v592
    %v760 = vunpack.c.h.b16 %v592
    %v761 = vunpack.c.l.b16 %v593
    %v762 = vunpack.c.l.b16 %v594
    %v763 = vunpack.c.h.b16 %v594
    %v764 = vunpack.c.l.b16 %v595
    %v765 = vunpack.c.l.b16 %v596
    %v766 = vunpack.c.h.b16 %v596
    %v767 = vunpack.c.l.b16 %v597
    %v768 = vunpack.c.l.b16 %v598
    %v769 = vunpack.c.h.b16 %v598
    %v770 = vunpack.c.l.b16 %v599
    %v771 = vunpack.c.l.b16 %v600
    %v772 = vunpack.c.h.b16 %v600
    %v773 = vunpack.c.l.b16 %v601
    %v774 = vunpack.c.l.b16 %v602
    %v775 = vunpack.c.h.b16 %v602
    %v776 = vunpack.c.l.b16 %v603
    %v777 = vunpack.c.l.b16 %v604
    %v778 = vunpack.c.h.b16 %v604
    %v779 = vunpack.c.l.b16 %v605
    %v780 = vunpack.c.l.b16 %v606
    %v781 = vunpack.c.h.b16 %v606
    %v782 = vunpack.c.l.b16 %v607
    %v783 = vunpack.c.l.b16 %v608
    %v784 = vunpack.c.h.b16 %v608
    %v785 = vunpack.c.l.b16 %v609
    %v786 = vunpack.c.l.b16 %v610
    %v787 = vunpack.c.h.b16 %v610
    %v788 = vunpack.c.l.b16 %v611
    %v789 = vunpack.c.l.b16 %v612
    %v790 = vunpack.c.h.b16 %v612
    %v791 = vunpack.c.l.b16 %v613
    %v792 = vpack.c.b16 %v699, %v696
    %v793 = vpack.c.b16 %v700, %v697
    %v794 = vpack.c.b16 %v701, %v698
    %v795 = vpack.c.b16 %v705, %v702
    %v796 = vpack.c.b16 %v706, %v703
    %v797 = vpack.c.b16 %v707, %v704
    %v798 = vpack.c.b16 %v711, %v708
    %v799 = vpack.c.b16 %v712, %v709
    %v800 = vpack.c.b16 %v713, %v710
    %v801 = vpack.c.b16 %v717, %v714
    %v802 = vpack.c.b16 %v718, %v715
    %v803 = vpack.c.b16 %v719, %v716
    %v804 = vpack.c.b16 %v723, %v720
    %v805 = vpack.c.b16 %v724, %v721
    %v806 = vpack.c.b16 %v725, %v722
    %v807 = vpack.c.b16 %v729, %v726
    %v808 = vpack.c.b16 %v730, %v727
    %v809 = vpack.c.b16 %v731, %v728
    %v810 = vpack.c.b16 %v735, %v732
    %v811 = vpack.c.b16 %v736, %v733
    %v812 = vpack.c.b16 %v737, %v734
    %v813 = vpack.c.b16 %v741, %v738
    %v814 = vpack.c.b16 %v742, %v739
    %v815 = vpack.c.b16 %v743, %v740
    %v816 = vpack.c.b16 %v747, %v744
    %v817 = vpack.c.b16 %v748, %v745
    %v818 = vpack.c.b16 %v749, %v746
    %v819 = vpack.c.b16 %v753, %v750
    %v820 = vpack.c.b16 %v754, %v751
    %v821 = vpack.c.b16 %v755, %v752
    %v822 = vpack.c.b16 %v759, %v756
    %v823 = vpack.c.b16 %v760, %v757
    %v824 = vpack.c.b16 %v761, %v758
    %v825 = vpack.c.b16 %v765, %v762
    %v826 = vpack.c.b16 %v766, %v763
    %v827 = vpack.c.b16 %v767, %v764
    %v828 = vpack.c.b16 %v771, %v768
    %v829 = vpack.c.b16 %v772, %v769
    %v830 = vpack.c.b16 %v773, %v770
    %v831 = vpack.c.b16 %v777, %v774
    %v832 = vpack.c.b16 %v778, %v775
    %v833 = vpack.c.b16 %v779, %v776
    %v834 = vpack.c.b16 %v783, %v780
    %v835 = vpack.c.b16 %v784, %v781
    %v836 = vpack.c.b16 %v785, %v782
    %v837 = vpack.c.b16 %v789, %v786
    %v838 = vpack.c.b16 %v790, %v787
    %v839 = vpack.c.b16 %v791, %v788
    %888 = vmatprep.subr.bf16.mxu0 %v814
    %889 = vmatpush1.bf16.msra.mxu0 %v813
    %890 = vmatprep.subr.bf16.mxu0 %v811
    %891 = vmatpush1.bf16.msra.mxu0 %v810
    %892 = vmatprep.subr.bf16.mxu0 %v808
    %893 = vmatpush1.bf16.msra.mxu0 %v807
    %894 = vmatprep.subr.bf16.mxu0 %v805
    %895 = vmatpush1.bf16.msra.mxu0 %v804
    %896 = vmatprep.subr.bf16.mxu0 %v802
    %897 = vmatpush1.bf16.msra.mxu0 %v801
    %898 = vmatprep.subr.bf16.mxu0 %v799
    %899 = vmatpush1.bf16.msra.mxu0 %v798
    %900 = vmatprep.subr.bf16.mxu0 %v796
    %901 = vmatpush1.bf16.msra.mxu0 %v795
    %902 = vmatprep.subr.bf16.mxu0 %v793
    %903 = vmatpush1.bf16.msra.mxu0 %v792
    %904 = vmatprep.subr.bf16.mxu0 %v838
    %905 = vmatpush2.bf16.msra.mxu0 %v837
    %906 = vmatprep.subr.bf16.mxu0 %v835
    %907 = vmatpush2.bf16.msra.mxu0 %v834
    %908 = vmatprep.subr.bf16.mxu0 %v832
    %909 = vmatpush2.bf16.msra.mxu0 %v831
    %910 = vmatprep.subr.bf16.mxu0 %v829
    %911 = vmatpush2.bf16.msra.mxu0 %v828
    %912 = vmatprep.subr.bf16.mxu0 %v826
    %913 = vmatpush2.bf16.msra.mxu0 %v825
    %914 = vmatprep.subr.bf16.mxu0 %v823
    %915 = vmatpush2.bf16.msra.mxu0 %v822
    %916 = vmatprep.subr.bf16.mxu0 %v820
    %917 = vmatpush2.bf16.msra.mxu0 %v819
    %918 = vmatprep.subr.bf16.mxu0 %v817
    %919 = vmatpush2.bf16.msra.mxu0 %v816
    %920 = vmatprep.mubr.bf16.mxu0 %v549
    %921 = vmatmul.mubr.bf16.gmra.mxu0 %v548
    %v922 = vpop.f32.mrf.mxu0
    %v923 = vadd.f32 %v620, %v922
    %v924 = vpop.f32.mrf.mxu0
    %v925 = vadd.f32 %v624, %v924
    %v926 = vpop.f32.mrf.mxu0
    %v927 = vpop.f32.mrf.mxu0
    %928 = vdwg.mxu0
    %929 = vmatprep.subr.bf16.mxu0 0
    %930 = vmatpush1.bf16.msra.mxu0 %v815
    %931 = vmatprep.subr.bf16.mxu0 0
    %932 = vmatpush1.bf16.msra.mxu0 %v812
    %933 = vmatprep.subr.bf16.mxu0 0
    %934 = vmatpush1.bf16.msra.mxu0 %v809
    %935 = vmatprep.subr.bf16.mxu0 0
    %936 = vmatpush1.bf16.msra.mxu0 %v806
    %937 = vmatprep.subr.bf16.mxu0 0
    %938 = vmatpush1.bf16.msra.mxu0 %v803
    %939 = vmatprep.subr.bf16.mxu0 0
    %940 = vmatpush1.bf16.msra.mxu0 %v800
    %941 = vmatprep.subr.bf16.mxu0 0
    %942 = vmatpush1.bf16.msra.mxu0 %v797
    %943 = vmatprep.subr.bf16.mxu0 0
    %944 = vmatpush1.bf16.msra.mxu0 %v794
    %945 = vmatprep.subr.bf16.mxu0 0
    %946 = vmatpush2.bf16.msra.mxu0 %v839
    %947 = vmatprep.subr.bf16.mxu0 0
    %948 = vmatpush2.bf16.msra.mxu0 %v836
    %949 = vmatprep.subr.bf16.mxu0 0
    %950 = vmatpush2.bf16.msra.mxu0 %v833
    %951 = vmatprep.subr.bf16.mxu0 0
    %952 = vmatpush2.bf16.msra.mxu0 %v830
    %953 = vmatprep.subr.bf16.mxu0 0
    %954 = vmatpush2.bf16.msra.mxu0 %v827
    %955 = vmatprep.subr.bf16.mxu0 0
    %956 = vmatpush2.bf16.msra.mxu0 %v824
    %957 = vmatprep.subr.bf16.mxu0 0
    %958 = vmatpush2.bf16.msra.mxu0 %v821
    %959 = vmatprep.subr.bf16.mxu0 0
    %960 = vmatpush2.bf16.msra.mxu0 %v818
    %961 = vmatprep.mubr.bf16.mxu0 %v549
    %962 = vmatmul.mubr.bf16.gmra.mxu0 %v548
    %v963 = vpop.f32.mrf.mxu0
    %v964 = vadd.f32 %v628, %v963
    %v965 = vpop.f32.mrf.mxu0
    %v966 = vpop.f32.mrf.mxu0
    %v967 = vpop.f32.mrf.mxu0
    %968 = vdwg.mxu0
    %v969 = vmax.f32 %v923, 0.0
    %v970 = vmax.f32 %v925, 0.0
    %v971 = vmax.f32 %v964, 0.0
    %v972 = vpack.c.bf16 %v969, %v969
    %v973 = vpack.c.bf16 %v970, %v970
    %v974 = vpack.c.bf16 %v971, %v971
    %v975 = vld [vmem:[#allocation2 + $0x480] sm:$0xff]
    %v976 = vld [vmem:[#allocation2 + $0x48c] sm:$0xff]
    %v977 = vld [vmem:[#allocation2 + $0x498] sm:$0xff]
    %v978 = vld [vmem:[#allocation2 + $0x4a4] sm:$0xff]
    %v979 = vld [vmem:[#allocation2 + $0x4b0] sm:$0xff]
    %v980 = vld [vmem:[#allocation2 + $0x4bc] sm:$0xff]
    %v981 = vld [vmem:[#allocation2 + $0x4c8] sm:$0xff]
    %v982 = vld [vmem:[#allocation2 + $0x4d4] sm:$0xff]
    %v983 = vld [vmem:[#allocation2 + $0x4e0] sm:$0xff]
    %v984 = vld [vmem:[#allocation2 + $0x4ec] sm:$0xff]
    %v985 = vld [vmem:[#allocation2 + $0x4f8] sm:$0xff]
    %v986 = vld [vmem:[#allocation2 + $0x504] sm:$0xff]
    %v987 = vld [vmem:[#allocation2 + $0x510] sm:$0xff]
    %v988 = vld [vmem:[#allocation2 + $0x51c] sm:$0xff]
    %v989 = vld [vmem:[#allocation2 + $0x528] sm:$0xff]
    %v990 = vld [vmem:[#allocation2 + $0x534] sm:$0xff]
    %v991 = vld [vmem:[#allocation2 + $0x540] sm:$0xff]
    %v992 = vld [vmem:[#allocation2 + $0x54c] sm:$0xff]
    %v993 = vld [vmem:[#allocation2 + $0x558] sm:$0xff]
    %v994 = vld [vmem:[#allocation2 + $0x564] sm:$0xff]
    %v995 = vld [vmem:[#allocation2 + $0x570] sm:$0xff]
    %v996 = vld [vmem:[#allocation2 + $0x57c] sm:$0xff]
    %v997 = vld [vmem:[#allocation2 + $0x588] sm:$0xff]
    %v998 = vld [vmem:[#allocation2 + $0x594] sm:$0xff]
    %v999 = vld [vmem:[#allocation2 + $0x5a0] sm:$0xff]
    %v1000 = vld [vmem:[#allocation2 + $0x5ac] sm:$0xff]
    %v1001 = vld [vmem:[#allocation2 + $0x5b8] sm:$0xff]
    %v1002 = vld [vmem:[#allocation2 + $0x5c4] sm:$0xff]
    %v1003 = vld [vmem:[#allocation2 + $0x5d0] sm:$0xff]
    %v1004 = vld [vmem:[#allocation2 + $0x5dc] sm:$0xff]
    %v1005 = vld [vmem:[#allocation2 + $0x5e8] sm:$0xff]
    %v1006 = vld [vmem:[#allocation2 + $0x5f4] sm:$0xff]
    %v1007 = vld [vmem:[#allocation2 + $0x600] sm:$0xff]
    %v1008 = vld [vmem:[#allocation2 + $0x60c] sm:$0xff]
    %v1009 = vld [vmem:[#allocation2 + $0x618] sm:$0xff]
    %v1010 = vld [vmem:[#allocation2 + $0x624] sm:$0xff]
    %v1011 = vld [vmem:[#allocation2 + $0x630] sm:$0xff]
    %v1012 = vld [vmem:[#allocation2 + $0x63c] sm:$0xff]
    %v1013 = vld [vmem:[#allocation2 + $0x648] sm:$0xff]
    %v1014 = vld [vmem:[#allocation2 + $0x654] sm:$0xff]
    %v1015 = vld [vmem:[#allocation2 + $0x660] sm:$0xff]
    %v1016 = vld [vmem:[#allocation2 + $0x66c] sm:$0xff]
    %v1017 = vld [vmem:[#allocation2 + $0x678] sm:$0xff]
    %v1018 = vld [vmem:[#allocation2 + $0x684] sm:$0xff]
    %v1019 = vld [vmem:[#allocation2 + $0x690] sm:$0xff]
    %v1020 = vld [vmem:[#allocation2 + $0x69c] sm:$0xff]
    %v1021 = vld [vmem:[#allocation2 + $0x6a8] sm:$0xff]
    %v1022 = vld [vmem:[#allocation2 + $0x6b4] sm:$0xff]
    %s1023 = scalar_lea.vmem [#allocation4], 9
    %v1024 = vld [vmem:[%s1023] sm:$0x3]
    %v1026 = vlaneseq
    %v1027 = vshrl.u32 %v1026, 7
    %v1028 = vsub.s32 0, %v1027
    %v1029 = vrot.slane %v1024, %v1028
    %v1030 = vlaneseq
    %v1031 = vshrl.u32 %v1030, 7
    %v1032 = vsub.s32 1, %v1031
    %v1033 = vrot.slane %v1024, %v1032
    %v1084 = vunpack.c.l.b16 %v975
    %v1085 = vunpack.c.h.b16 %v975
    %v1086 = vunpack.c.l.b16 %v976
    %v1087 = vunpack.c.h.b16 %v976
    %v1088 = vunpack.c.l.b16 %v977
    %v1089 = vunpack.c.h.b16 %v977
    %v1090 = vunpack.c.l.b16 %v978
    %v1091 = vunpack.c.h.b16 %v978
    %v1092 = vunpack.c.l.b16 %v979
    %v1093 = vunpack.c.h.b16 %v979
    %v1094 = vunpack.c.l.b16 %v980
    %v1095 = vunpack.c.h.b16 %v980
    %v1096 = vunpack.c.l.b16 %v981
    %v1097 = vunpack.c.h.b16 %v981
    %v1098 = vunpack.c.l.b16 %v982
    %v1099 = vunpack.c.h.b16 %v982
    %v1100 = vunpack.c.l.b16 %v983
    %v1101 = vunpack.c.h.b16 %v983
    %v1102 = vunpack.c.l.b16 %v984
    %v1103 = vunpack.c.h.b16 %v984
    %v1104 = vunpack.c.l.b16 %v985
    %v1105 = vunpack.c.h.b16 %v985
    %v1106 = vunpack.c.l.b16 %v986
    %v1107 = vunpack.c.h.b16 %v986
    %v1108 = vunpack.c.l.b16 %v987
    %v1109 = vunpack.c.h.b16 %v987
    %v1110 = vunpack.c.l.b16 %v988
    %v1111 = vunpack.c.h.b16 %v988
    %v1112 = vunpack.c.l.b16 %v989
    %v1113 = vunpack.c.h.b16 %v989
    %v1114 = vunpack.c.l.b16 %v990
    %v1115 = vunpack.c.h.b16 %v990
    %v1116 = vunpack.c.l.b16 %v991
    %v1117 = vunpack.c.h.b16 %v991
    %v1118 = vunpack.c.l.b16 %v992
    %v1119 = vunpack.c.h.b16 %v992
    %v1120 = vunpack.c.l.b16 %v993
    %v1121 = vunpack.c.h.b16 %v993
    %v1122 = vunpack.c.l.b16 %v994
    %v1123 = vunpack.c.h.b16 %v994
    %v1124 = vunpack.c.l.b16 %v995
    %v1125 = vunpack.c.h.b16 %v995
    %v1126 = vunpack.c.l.b16 %v996
    %v1127 = vunpack.c.h.b16 %v996
    %v1128 = vunpack.c.l.b16 %v997
    %v1129 = vunpack.c.h.b16 %v997
    %v1130 = vunpack.c.l.b16 %v998
    %v1131 = vunpack.c.h.b16 %v998
    %v1132 = vunpack.c.l.b16 %v999
    %v1133 = vunpack.c.h.b16 %v999
    %v1134 = vunpack.c.l.b16 %v1000
    %v1135 = vunpack.c.h.b16 %v1000
    %v1136 = vunpack.c.l.b16 %v1001
    %v1137 = vunpack.c.h.b16 %v1001
    %v1138 = vunpack.c.l.b16 %v1002
    %v1139 = vunpack.c.h.b16 %v1002
    %v1140 = vunpack.c.l.b16 %v1003
    %v1141 = vunpack.c.h.b16 %v1003
    %v1142 = vunpack.c.l.b16 %v1004
    %v1143 = vunpack.c.h.b16 %v1004
    %v1144 = vunpack.c.l.b16 %v1005
    %v1145 = vunpack.c.h.b16 %v1005
    %v1146 = vunpack.c.l.b16 %v1006
    %v1147 = vunpack.c.h.b16 %v1006
    %v1148 = vunpack.c.l.b16 %v1007
    %v1149 = vunpack.c.h.b16 %v1007
    %v1150 = vunpack.c.l.b16 %v1008
    %v1151 = vunpack.c.h.b16 %v1008
    %v1152 = vunpack.c.l.b16 %v1009
    %v1153 = vunpack.c.h.b16 %v1009
    %v1154 = vunpack.c.l.b16 %v1010
    %v1155 = vunpack.c.h.b16 %v1010
    %v1156 = vunpack.c.l.b16 %v1011
    %v1157 = vunpack.c.h.b16 %v1011
    %v1158 = vunpack.c.l.b16 %v1012
    %v1159 = vunpack.c.h.b16 %v1012
    %v1160 = vunpack.c.l.b16 %v1013
    %v1161 = vunpack.c.h.b16 %v1013
    %v1162 = vunpack.c.l.b16 %v1014
    %v1163 = vunpack.c.h.b16 %v1014
    %v1164 = vunpack.c.l.b16 %v1015
    %v1165 = vunpack.c.h.b16 %v1015
    %v1166 = vunpack.c.l.b16 %v1016
    %v1167 = vunpack.c.h.b16 %v1016
    %v1168 = vunpack.c.l.b16 %v1017
    %v1169 = vunpack.c.h.b16 %v1017
    %v1170 = vunpack.c.l.b16 %v1018
    %v1171 = vunpack.c.h.b16 %v1018
    %v1172 = vunpack.c.l.b16 %v1019
    %v1173 = vunpack.c.h.b16 %v1019
    %v1174 = vunpack.c.l.b16 %v1020
    %v1175 = vunpack.c.h.b16 %v1020
    %v1176 = vunpack.c.l.b16 %v1021
    %v1177 = vunpack.c.h.b16 %v1021
    %v1178 = vunpack.c.l.b16 %v1022
    %v1179 = vunpack.c.h.b16 %v1022
    %v1180 = vpack.c.b16 %v1086, %v1084
    %v1181 = vpack.c.b16 %v1087, %v1085
    %v1182 = vpack.c.b16 %v1090, %v1088
    %v1183 = vpack.c.b16 %v1091, %v1089
    %v1184 = vpack.c.b16 %v1094, %v1092
    %v1185 = vpack.c.b16 %v1095, %v1093
    %v1186 = vpack.c.b16 %v1098, %v1096
    %v1187 = vpack.c.b16 %v1099, %v1097
    %v1188 = vpack.c.b16 %v1102, %v1100
    %v1189 = vpack.c.b16 %v1103, %v1101
    %v1190 = vpack.c.b16 %v1106, %v1104
    %v1191 = vpack.c.b16 %v1107, %v1105
    %v1192 = vpack.c.b16 %v1110, %v1108
    %v1193 = vpack.c.b16 %v1111, %v1109
    %v1194 = vpack.c.b16 %v1114, %v1112
    %v1195 = vpack.c.b16 %v1115, %v1113
    %v1196 = vpack.c.b16 %v1118, %v1116
    %v1197 = vpack.c.b16 %v1119, %v1117
    %v1198 = vpack.c.b16 %v1122, %v1120
    %v1199 = vpack.c.b16 %v1123, %v1121
    %v1200 = vpack.c.b16 %v1126, %v1124
    %v1201 = vpack.c.b16 %v1127, %v1125
    %v1202 = vpack.c.b16 %v1130, %v1128
    %v1203 = vpack.c.b16 %v1131, %v1129
    %v1204 = vpack.c.b16 %v1134, %v1132
    %v1205 = vpack.c.b16 %v1135, %v1133
    %v1206 = vpack.c.b16 %v1138, %v1136
    %v1207 = vpack.c.b16 %v1139, %v1137
    %v1208 = vpack.c.b16 %v1142, %v1140
    %v1209 = vpack.c.b16 %v1143, %v1141
    %v1210 = vpack.c.b16 %v1146, %v1144
    %v1211 = vpack.c.b16 %v1147, %v1145
    %v1212 = vpack.c.b16 %v1150, %v1148
    %v1213 = vpack.c.b16 %v1151, %v1149
    %v1214 = vpack.c.b16 %v1154, %v1152
    %v1215 = vpack.c.b16 %v1155, %v1153
    %v1216 = vpack.c.b16 %v1158, %v1156
    %v1217 = vpack.c.b16 %v1159, %v1157
    %v1218 = vpack.c.b16 %v1162, %v1160
    %v1219 = vpack.c.b16 %v1163, %v1161
    %v1220 = vpack.c.b16 %v1166, %v1164
    %v1221 = vpack.c.b16 %v1167, %v1165
    %v1222 = vpack.c.b16 %v1170, %v1168
    %v1223 = vpack.c.b16 %v1171, %v1169
    %v1224 = vpack.c.b16 %v1174, %v1172
    %v1225 = vpack.c.b16 %v1175, %v1173
    %v1226 = vpack.c.b16 %v1178, %v1176
    %v1227 = vpack.c.b16 %v1179, %v1177
    %1276 = vmatprep.subr.bf16.mxu0 %v1195
    %1277 = vmatpush1.bf16.msra.mxu0 %v1194
    %1278 = vmatprep.subr.bf16.mxu0 %v1193
    %1279 = vmatpush1.bf16.msra.mxu0 %v1192
    %1280 = vmatprep.subr.bf16.mxu0 %v1191
    %1281 = vmatpush1.bf16.msra.mxu0 %v1190
    %1282 = vmatprep.subr.bf16.mxu0 %v1189
    %1283 = vmatpush1.bf16.msra.mxu0 %v1188
    %1284 = vmatprep.subr.bf16.mxu0 %v1187
    %1285 = vmatpush1.bf16.msra.mxu0 %v1186
    %1286 = vmatprep.subr.bf16.mxu0 %v1185
    %1287 = vmatpush1.bf16.msra.mxu0 %v1184
    %1288 = vmatprep.subr.bf16.mxu0 %v1183
    %1289 = vmatpush1.bf16.msra.mxu0 %v1182
    %1290 = vmatprep.subr.bf16.mxu0 %v1181
    %1291 = vmatpush1.bf16.msra.mxu0 %v1180
    %1292 = vmatprep.subr.bf16.mxu0 %v1211
    %1293 = vmatpush2.bf16.msra.mxu0 %v1210
    %1294 = vmatprep.subr.bf16.mxu0 %v1209
    %1295 = vmatpush2.bf16.msra.mxu0 %v1208
    %1296 = vmatprep.subr.bf16.mxu0 %v1207
    %1297 = vmatpush2.bf16.msra.mxu0 %v1206
    %1298 = vmatprep.subr.bf16.mxu0 %v1205
    %1299 = vmatpush2.bf16.msra.mxu0 %v1204
    %1300 = vmatprep.subr.bf16.mxu0 %v1203
    %1301 = vmatpush2.bf16.msra.mxu0 %v1202
    %1302 = vmatprep.subr.bf16.mxu0 %v1201
    %1303 = vmatpush2.bf16.msra.mxu0 %v1200
    %1304 = vmatprep.subr.bf16.mxu0 %v1199
    %1305 = vmatpush2.bf16.msra.mxu0 %v1198
    %1306 = vmatprep.subr.bf16.mxu0 %v1197
    %1307 = vmatpush2.bf16.msra.mxu0 %v1196
    %1308 = vmatprep.mubr.bf16.mxu0 %v973
    %1309 = vmatmul.mubr.bf16.gmra.mxu0 %v972
    %v1310 = vpop.f32.mrf.mxu0
    %v1311 = vadd.f32 %v1029, %v1310
    %v1312 = vpop.f32.mrf.mxu0
    %v1313 = vadd.f32 %v1033, %v1312
    %v1314 = vpop.f32.mrf.mxu0
    %v1315 = vpop.f32.mrf.mxu0
    %1316 = vdwg.mxu0
    %1317 = vmatprep.subr.bf16.mxu0 %v1227
    %1318 = vmatpush1.bf16.msra.mxu0 %v1226
    %1319 = vmatprep.subr.bf16.mxu0 %v1225
    %1320 = vmatpush1.bf16.msra.mxu0 %v1224
    %1321 = vmatprep.subr.bf16.mxu0 %v1223
    %1322 = vmatpush1.bf16.msra.mxu0 %v1222
    %1323 = vmatprep.subr.bf16.mxu0 %v1221
    %1324 = vmatpush1.bf16.msra.mxu0 %v1220
    %1325 = vmatprep.subr.bf16.mxu0 %v1219
    %1326 = vmatpush1.bf16.msra.mxu0 %v1218
    %1327 = vmatprep.subr.bf16.mxu0 %v1217
    %1328 = vmatpush1.bf16.msra.mxu0 %v1216
    %1329 = vmatprep.subr.bf16.mxu0 %v1215
    %1330 = vmatpush1.bf16.msra.mxu0 %v1214
    %1331 = vmatprep.subr.bf16.mxu0 %v1213
    %1332 = vmatpush1.bf16.msra.mxu0 %v1212
    %1333 = vmatprep.subr.bf16.mxu0 0
    %1334 = vmatpush2.bf16.msra.mxu0 0
    %1335 = vmatprep.subr.bf16.mxu0 0
    %1336 = vmatpush2.bf16.msra.mxu0 0
    %1337 = vmatprep.subr.bf16.mxu0 0
    %1338 = vmatpush2.bf16.msra.mxu0 0
    %1339 = vmatprep.subr.bf16.mxu0 0
    %1340 = vmatpush2.bf16.msra.mxu0 0
    %1341 = vmatprep.subr.bf16.mxu0 0
    %1342 = vmatpush2.bf16.msra.mxu0 0
    %1343 = vmatprep.subr.bf16.mxu0 0
    %1344 = vmatpush2.bf16.msra.mxu0 0
    %1345 = vmatprep.subr.bf16.mxu0 0
    %1346 = vmatpush2.bf16.msra.mxu0 0
    %1347 = vmatprep.subr.bf16.mxu0 0
    %1348 = vmatpush2.bf16.msra.mxu0 0
    %1349 = vmatprep.mubr.bf16.mxu0 0
    %1350 = vmatmul.mubr.bf16.gmra.mxu0 %v974
    %v1351 = vpop.f32.mrf.mxu0
    %v1352 = vadd.f32 %v1311, %v1351
    %v1353 = vpop.f32.mrf.mxu0
    %v1354 = vadd.f32 %v1313, %v1353
    %v1355 = vpop.f32.mrf.mxu0
    %v1356 = vpop.f32.mrf.mxu0
    %1357 = vdwg.mxu0
    %v1358 = vmax.f32 %v1352, 0.0
    %v1359 = vmax.f32 %v1354, 0.0
    %v1360 = vpack.c.bf16 %v1358, %v1358
    %v1361 = vpack.c.bf16 %v1359, %v1359
    %v1362 = vld [vmem:[#allocation2 + $0x6c0] sm:$0xff]
    %v1363 = vld [vmem:[#allocation2 + $0x6cc] sm:$0xff]
    %v1364 = vld [vmem:[#allocation2 + $0x6d8] sm:$0xff]
    %v1365 = vld [vmem:[#allocation2 + $0x6e4] sm:$0xff]
    %v1366 = vld [vmem:[#allocation2 + $0x6f0] sm:$0xff]
    %v1367 = vld [vmem:[#allocation2 + $0x6fc] sm:$0xff]
    %v1368 = vld [vmem:[#allocation2 + $0x708] sm:$0xff]
    %v1369 = vld [vmem:[#allocation2 + $0x714] sm:$0xff]
    %v1370 = vld [vmem:[#allocation2 + $0x720] sm:$0xff]
    %v1371 = vld [vmem:[#allocation2 + $0x72c] sm:$0xff]
    %v1372 = vld [vmem:[#allocation2 + $0x738] sm:$0xff]
    %v1373 = vld [vmem:[#allocation2 + $0x744] sm:$0xff]
    %v1374 = vld [vmem:[#allocation2 + $0x750] sm:$0xff]
    %v1375 = vld [vmem:[#allocation2 + $0x75c] sm:$0xff]
    %v1376 = vld [vmem:[#allocation2 + $0x768] sm:$0xff]
    %v1377 = vld [vmem:[#allocation2 + $0x774] sm:$0xff]
    %v1378 = vld [vmem:[#allocation2 + $0x780] sm:$0xff]
    %v1379 = vld [vmem:[#allocation2 + $0x78c] sm:$0xff]
    %v1380 = vld [vmem:[#allocation2 + $0x798] sm:$0xff]
    %v1381 = vld [vmem:[#allocation2 + $0x7a4] sm:$0xff]
    %v1382 = vld [vmem:[#allocation2 + $0x7b0] sm:$0xff]
    %v1383 = vld [vmem:[#allocation2 + $0x7bc] sm:$0xff]
    %v1384 = vld [vmem:[#allocation2 + $0x7c8] sm:$0xff]
    %v1385 = vld [vmem:[#allocation2 + $0x7d4] sm:$0xff]
    %v1386 = vld [vmem:[#allocation2 + $0x7e0] sm:$0xff]
    %v1387 = vld [vmem:[#allocation2 + $0x7ec] sm:$0xff]
    %v1388 = vld [vmem:[#allocation2 + $0x7f8] sm:$0xff]
    %v1389 = vld [vmem:[#allocation2 + $0x804] sm:$0xff]
    %v1390 = vld [vmem:[#allocation2 + $0x810] sm:$0xff]
    %v1391 = vld [vmem:[#allocation2 + $0x81c] sm:$0xff]
    %v1392 = vld [vmem:[#allocation2 + $0x828] sm:$0xff]
    %v1393 = vld [vmem:[#allocation2 + $0x834] sm:$0xff]
    %s1394 = scalar_lea.vmem [#allocation4], 12
    %v1395 = vld [vmem:[%s1394] sm:$0x3]
    %v1397 = vlaneseq
    %v1398 = vshrl.u32 %v1397, 7
    %v1399 = vsub.s32 0, %v1398
    %v1400 = vrot.slane %v1395, %v1399
    %v1401 = vlaneseq
    %v1402 = vshrl.u32 %v1401, 7
    %v1403 = vsub.s32 1, %v1402
    %v1404 = vrot.slane %v1395, %v1403
    %v1439 = vunpack.c.l.b16 %v1362
    %v1440 = vunpack.c.h.b16 %v1362
    %v1441 = vunpack.c.l.b16 %v1363
    %v1442 = vunpack.c.h.b16 %v1363
    %v1443 = vunpack.c.l.b16 %v1364
    %v1444 = vunpack.c.h.b16 %v1364
    %v1445 = vunpack.c.l.b16 %v1365
    %v1446 = vunpack.c.h.b16 %v1365
    %v1447 = vunpack.c.l.b16 %v1366
    %v1448 = vunpack.c.h.b16 %v1366
    %v1449 = vunpack.c.l.b16 %v1367
    %v1450 = vunpack.c.h.b16 %v1367
    %v1451 = vunpack.c.l.b16 %v1368
    %v1452 = vunpack.c.h.b16 %v1368
    %v1453 = vunpack.c.l.b16 %v1369
    %v1454 = vunpack.c.h.b16 %v1369
    %v1455 = vunpack.c.l.b16 %v1370
    %v1456 = vunpack.c.h.b16 %v1370
    %v1457 = vunpack.c.l.b16 %v1371
    %v1458 = vunpack.c.h.b16 %v1371
    %v1459 = vunpack.c.l.b16 %v1372
    %v1460 = vunpack.c.h.b16 %v1372
    %v1461 = vunpack.c.l.b16 %v1373
    %v1462 = vunpack.c.h.b16 %v1373
    %v1463 = vunpack.c.l.b16 %v1374
    %v1464 = vunpack.c.h.b16 %v1374
    %v1465 = vunpack.c.l.b16 %v1375
    %v1466 = vunpack.c.h.b16 %v1375
    %v1467 = vunpack.c.l.b16 %v1376
    %v1468 = vunpack.c.h.b16 %v1376
    %v1469 = vunpack.c.l.b16 %v1377
    %v1470 = vunpack.c.h.b16 %v1377
    %v1471 = vunpack.c.l.b16 %v1378
    %v1472 = vunpack.c.h.b16 %v1378
    %v1473 = vunpack.c.l.b16 %v1379
    %v1474 = vunpack.c.h.b16 %v1379
    %v1475 = vunpack.c.l.b16 %v1380
    %v1476 = vunpack.c.h.b16 %v1380
    %v1477 = vunpack.c.l.b16 %v1381
    %v1478 = vunpack.c.h.b16 %v1381
    %v1479 = vunpack.c.l.b16 %v1382
    %v1480 = vunpack.c.h.b16 %v1382
    %v1481 = vunpack.c.l.b16 %v1383
    %v1482 = vunpack.c.h.b16 %v1383
    %v1483 = vunpack.c.l.b16 %v1384
    %v1484 = vunpack.c.h.b16 %v1384
    %v1485 = vunpack.c.l.b16 %v1385
    %v1486 = vunpack.c.h.b16 %v1385
    %v1487 = vunpack.c.l.b16 %v1386
    %v1488 = vunpack.c.h.b16 %v1386
    %v1489 = vunpack.c.l.b16 %v1387
    %v1490 = vunpack.c.h.b16 %v1387
    %v1491 = vunpack.c.l.b16 %v1388
    %v1492 = vunpack.c.h.b16 %v1388
    %v1493 = vunpack.c.l.b16 %v1389
    %v1494 = vunpack.c.h.b16 %v1389
    %v1495 = vunpack.c.l.b16 %v1390
    %v1496 = vunpack.c.h.b16 %v1390
    %v1497 = vunpack.c.l.b16 %v1391
    %v1498 = vunpack.c.h.b16 %v1391
    %v1499 = vunpack.c.l.b16 %v1392
    %v1500 = vunpack.c.h.b16 %v1392
    %v1501 = vunpack.c.l.b16 %v1393
    %v1502 = vunpack.c.h.b16 %v1393
    %v1503 = vpack.c.b16 %v1441, %v1439
    %v1504 = vpack.c.b16 %v1442, %v1440
    %v1505 = vpack.c.b16 %v1445, %v1443
    %v1506 = vpack.c.b16 %v1446, %v1444
    %v1507 = vpack.c.b16 %v1449, %v1447
    %v1508 = vpack.c.b16 %v1450, %v1448
    %v1509 = vpack.c.b16 %v1453, %v1451
    %v1510 = vpack.c.b16 %v1454, %v1452
    %v1511 = vpack.c.b16 %v1457, %v1455
    %v1512 = vpack.c.b16 %v1458, %v1456
    %v1513 = vpack.c.b16 %v1461, %v1459
    %v1514 = vpack.c.b16 %v1462, %v1460
    %v1515 = vpack.c.b16 %v1465, %v1463
    %v1516 = vpack.c.b16 %v1466, %v1464
    %v1517 = vpack.c.b16 %v1469, %v1467
    %v1518 = vpack.c.b16 %v1470, %v1468
    %v1519 = vpack.c.b16 %v1473, %v1471
    %v1520 = vpack.c.b16 %v1474, %v1472
    %v1521 = vpack.c.b16 %v1477, %v1475
    %v1522 = vpack.c.b16 %v1478, %v1476
    %v1523 = vpack.c.b16 %v1481, %v1479
    %v1524 = vpack.c.b16 %v1482, %v1480
    %v1525 = vpack.c.b16 %v1485, %v1483
    %v1526 = vpack.c.b16 %v1486, %v1484
    %v1527 = vpack.c.b16 %v1489, %v1487
    %v1528 = vpack.c.b16 %v1490, %v1488
    %v1529 = vpack.c.b16 %v1493, %v1491
    %v1530 = vpack.c.b16 %v1494, %v1492
    %v1531 = vpack.c.b16 %v1497, %v1495
    %v1532 = vpack.c.b16 %v1498, %v1496
    %v1533 = vpack.c.b16 %v1501, %v1499
    %v1534 = vpack.c.b16 %v1502, %v1500
    %1567 = vmatprep.subr.bf16.mxu0 %v1518
    %1568 = vmatpush1.bf16.msra.mxu0 %v1517
    %1569 = vmatprep.subr.bf16.mxu0 %v1516
    %1570 = vmatpush1.bf16.msra.mxu0 %v1515
    %1571 = vmatprep.subr.bf16.mxu0 %v1514
    %1572 = vmatpush1.bf16.msra.mxu0 %v1513
    %1573 = vmatprep.subr.bf16.mxu0 %v1512
    %1574 = vmatpush1.bf16.msra.mxu0 %v1511
    %1575 = vmatprep.subr.bf16.mxu0 %v1510
    %1576 = vmatpush1.bf16.msra.mxu0 %v1509
    %1577 = vmatprep.subr.bf16.mxu0 %v1508
    %1578 = vmatpush1.bf16.msra.mxu0 %v1507
    %1579 = vmatprep.subr.bf16.mxu0 %v1506
    %1580 = vmatpush1.bf16.msra.mxu0 %v1505
    %1581 = vmatprep.subr.bf16.mxu0 %v1504
    %1582 = vmatpush1.bf16.msra.mxu0 %v1503
    %1583 = vmatprep.subr.bf16.mxu0 %v1534
    %1584 = vmatpush2.bf16.msra.mxu0 %v1533
    %1585 = vmatprep.subr.bf16.mxu0 %v1532
    %1586 = vmatpush2.bf16.msra.mxu0 %v1531
    %1587 = vmatprep.subr.bf16.mxu0 %v1530
    %1588 = vmatpush2.bf16.msra.mxu0 %v1529
    %1589 = vmatprep.subr.bf16.mxu0 %v1528
    %1590 = vmatpush2.bf16.msra.mxu0 %v1527
    %1591 = vmatprep.subr.bf16.mxu0 %v1526
    %1592 = vmatpush2.bf16.msra.mxu0 %v1525
    %1593 = vmatprep.subr.bf16.mxu0 %v1524
    %1594 = vmatpush2.bf16.msra.mxu0 %v1523
    %1595 = vmatprep.subr.bf16.mxu0 %v1522
    %1596 = vmatpush2.bf16.msra.mxu0 %v1521
    %1597 = vmatprep.subr.bf16.mxu0 %v1520
    %1598 = vmatpush2.bf16.msra.mxu0 %v1519
    %1599 = vmatprep.mubr.bf16.mxu0 %v1361
    %1600 = vmatmul.mubr.bf16.gmra.mxu0 %v1360
    %v1601 = vpop.f32.mrf.mxu0
    %v1602 = vadd.f32 %v1400, %v1601
    %v1603 = vpop.f32.mrf.mxu0
    %v1604 = vadd.f32 %v1404, %v1603
    %v1605 = vpop.f32.mrf.mxu0
    %v1606 = vpop.f32.mrf.mxu0
    %1607 = vdwg.mxu0
    %v1608 = vmax.f32 %v1602, 0.0
    %v1609 = vmax.f32 %v1604, 0.0
    %v1610 = vpack.c.bf16 %v1608, %v1608
    %v1611 = vpack.c.bf16 %v1609, %v1609
    %v1612 = vld [vmem:[#allocation2 + $0x840] sm:$0xf]
    %v1613 = vld [vmem:[#allocation2 + $0x84c] sm:$0xf]
    %v1614 = vld [vmem:[#allocation2 + $0x858] sm:$0xf]
    %v1615 = vld [vmem:[#allocation2 + $0x864] sm:$0xf]
    %v1616 = vld [vmem:[#allocation2 + $0x870] sm:$0xf]
    %v1617 = vld [vmem:[#allocation2 + $0x87c] sm:$0xf]
    %v1618 = vld [vmem:[#allocation2 + $0x888] sm:$0xf]
    %v1619 = vld [vmem:[#allocation2 + $0x894] sm:$0xf]
    %v1620 = vld [vmem:[#allocation2 + $0x8a0] sm:$0xf]
    %v1621 = vld [vmem:[#allocation2 + $0x8ac] sm:$0xf]
    %v1622 = vld [vmem:[#allocation2 + $0x8b8] sm:$0xf]
    %v1623 = vld [vmem:[#allocation2 + $0x8c4] sm:$0xf]
    %v1624 = vld [vmem:[#allocation2 + $0x8d0] sm:$0xf]
    %v1625 = vld [vmem:[#allocation2 + $0x8dc] sm:$0xf]
    %v1626 = vld [vmem:[#allocation2 + $0x8e8] sm:$0xf]
    %v1627 = vld [vmem:[#allocation2 + $0x8f4] sm:$0xf]
    %v1628 = vld [vmem:[#allocation2 + $0x900] sm:$0xf]
    %v1629 = vld [vmem:[#allocation2 + $0x90c] sm:$0xf]
    %v1630 = vld [vmem:[#allocation2 + $0x918] sm:$0xf]
    %v1631 = vld [vmem:[#allocation2 + $0x924] sm:$0xf]
    %v1632 = vld [vmem:[#allocation2 + $0x930] sm:$0xf]
    %v1633 = vld [vmem:[#allocation2 + $0x93c] sm:$0xf]
    %v1634 = vld [vmem:[#allocation2 + $0x948] sm:$0xf]
    %v1635 = vld [vmem:[#allocation2 + $0x954] sm:$0xf]
    %v1636 = vld [vmem:[#allocation2 + $0x960] sm:$0xf]
    %v1637 = vld [vmem:[#allocation2 + $0x96c] sm:$0xf]
    %v1638 = vld [vmem:[#allocation2 + $0x978] sm:$0xf]
    %v1639 = vld [vmem:[#allocation2 + $0x984] sm:$0xf]
    %v1640 = vld [vmem:[#allocation2 + $0x990] sm:$0xf]
    %v1641 = vld [vmem:[#allocation2 + $0x99c] sm:$0xf]
    %v1642 = vld [vmem:[#allocation2 + $0x9a8] sm:$0xf]
    %v1643 = vld [vmem:[#allocation2 + $0x9b4] sm:$0xf]
    %s1644 = scalar_lea.vmem [#allocation4], 15
    %v1645 = vld [vmem:[%s1644] sm:$0x1]
    %v1647 = vlaneseq
    %v1648 = vshrl.u32 %v1647, 7
    %v1649 = vsub.s32 0, %v1648
    %v1650 = vrot.slane %v1645, %v1649
    %v1684 = vunpack.c.l.b16 %v1612
    %v1685 = vunpack.c.l.b16 %v1613
    %v1686 = vunpack.c.l.b16 %v1614
    %v1687 = vunpack.c.l.b16 %v1615
    %v1688 = vunpack.c.l.b16 %v1616
    %v1689 = vunpack.c.l.b16 %v1617
    %v1690 = vunpack.c.l.b16 %v1618
    %v1691 = vunpack.c.l.b16 %v1619
    %v1692 = vunpack.c.l.b16 %v1620
    %v1693 = vunpack.c.l.b16 %v1621
    %v1694 = vunpack.c.l.b16 %v1622
    %v1695 = vunpack.c.l.b16 %v1623
    %v1696 = vunpack.c.l.b16 %v1624
    %v1697 = vunpack.c.l.b16 %v1625
    %v1698 = vunpack.c.l.b16 %v1626
    %v1699 = vunpack.c.l.b16 %v1627
    %v1700 = vunpack.c.l.b16 %v1628
    %v1701 = vunpack.c.l.b16 %v1629
    %v1702 = vunpack.c.l.b16 %v1630
    %v1703 = vunpack.c.l.b16 %v1631
    %v1704 = vunpack.c.l.b16 %v1632
    %v1705 = vunpack.c.l.b16 %v1633
    %v1706 = vunpack.c.l.b16 %v1634
    %v1707 = vunpack.c.l.b16 %v1635
    %v1708 = vunpack.c.l.b16 %v1636
    %v1709 = vunpack.c.l.b16 %v1637
    %v1710 = vunpack.c.l.b16 %v1638
    %v1711 = vunpack.c.l.b16 %v1639
    %v1712 = vunpack.c.l.b16 %v1640
    %v1713 = vunpack.c.l.b16 %v1641
    %v1714 = vunpack.c.l.b16 %v1642
    %v1715 = vunpack.c.l.b16 %v1643
    %v1716 = vpack.c.b16 %v1685, %v1684
    %v1717 = vpack.c.b16 %v1687, %v1686
    %v1718 = vpack.c.b16 %v1689, %v1688
    %v1719 = vpack.c.b16 %v1691, %v1690
    %v1720 = vpack.c.b16 %v1693, %v1692
    %v1721 = vpack.c.b16 %v1695, %v1694
    %v1722 = vpack.c.b16 %v1697, %v1696
    %v1723 = vpack.c.b16 %v1699, %v1698
    %v1724 = vpack.c.b16 %v1701, %v1700
    %v1725 = vpack.c.b16 %v1703, %v1702
    %v1726 = vpack.c.b16 %v1705, %v1704
    %v1727 = vpack.c.b16 %v1707, %v1706
    %v1728 = vpack.c.b16 %v1709, %v1708
    %v1729 = vpack.c.b16 %v1711, %v1710
    %v1730 = vpack.c.b16 %v1713, %v1712
    %v1731 = vpack.c.b16 %v1715, %v1714
    %1748 = vmatprep.subr.bf16.mxu0 0
    %1749 = vmatpush1.bf16.msra.mxu0 %v1723
    %1750 = vmatprep.subr.bf16.mxu0 0
    %1751 = vmatpush1.bf16.msra.mxu0 %v1722
    %1752 = vmatprep.subr.bf16.mxu0 0
    %1753 = vmatpush1.bf16.msra.mxu0 %v1721
    %1754 = vmatprep.subr.bf16.mxu0 0
    %1755 = vmatpush1.bf16.msra.mxu0 %v1720
    %1756 = vmatprep.subr.bf16.mxu0 0
    %1757 = vmatpush1.bf16.msra.mxu0 %v1719
    %1758 = vmatprep.subr.bf16.mxu0 0
    %1759 = vmatpush1.bf16.msra.mxu0 %v1718
    %1760 = vmatprep.subr.bf16.mxu0 0
    %1761 = vmatpush1.bf16.msra.mxu0 %v1717
    %1762 = vmatprep.subr.bf16.mxu0 0
    %1763 = vmatpush1.bf16.msra.mxu0 %v1716
    %1764 = vmatprep.subr.bf16.mxu0 0
    %1765 = vmatpush2.bf16.msra.mxu0 %v1731
    %1766 = vmatprep.subr.bf16.mxu0 0
    %1767 = vmatpush2.bf16.msra.mxu0 %v1730
    %1768 = vmatprep.subr.bf16.mxu0 0
    %1769 = vmatpush2.bf16.msra.mxu0 %v1729
    %1770 = vmatprep.subr.bf16.mxu0 0
    %1771 = vmatpush2.bf16.msra.mxu0 %v1728
    %1772 = vmatprep.subr.bf16.mxu0 0
    %1773 = vmatpush2.bf16.msra.mxu0 %v1727
    %1774 = vmatprep.subr.bf16.mxu0 0
    %1775 = vmatpush2.bf16.msra.mxu0 %v1726
    %1776 = vmatprep.subr.bf16.mxu0 0
    %1777 = vmatpush2.bf16.msra.mxu0 %v1725
    %1778 = vmatprep.subr.bf16.mxu0 0
    %1779 = vmatpush2.bf16.msra.mxu0 %v1724
    %1780 = vmatprep.mubr.bf16.mxu0 %v1611
    %1781 = vmatmul.mubr.bf16.gmra.mxu0 %v1610
    %v1782 = vpop.f32.mrf.mxu0
    %v1783 = vadd.f32 %v1650, %v1782
    %v1784 = vpop.f32.mrf.mxu0
    %v1785 = vpop.f32.mrf.mxu0
    %v1786 = vpop.f32.mrf.mxu0
    %1787 = vdwg.mxu0
    %v1788 = vmax.f32 %v1783, 0.0
    %v1789 = vpack.c.bf16 %v1788, %v1788
    %v1790 = vld [vmem:[#allocation2 + $0x9c0] sm:$0xf]
    %v1791 = vld [vmem:[#allocation2 + $0x9cc] sm:$0xf]
    %v1792 = vld [vmem:[#allocation2 + $0x9d8] sm:$0xf]
    %v1793 = vld [vmem:[#allocation2 + $0x9e4] sm:$0xf]
    %v1794 = vld [vmem:[#allocation2 + $0x9f0] sm:$0xf]
    %v1795 = vld [vmem:[#allocation2 + $0x9fc] sm:$0xf]
    %v1796 = vld [vmem:[#allocation2 + $0xa08] sm:$0xf]
    %v1797 = vld [vmem:[#allocation2 + $0xa14] sm:$0xf]
    %v1798 = vld [vmem:[#allocation2 + $0xa20] sm:$0xf]
    %v1799 = vld [vmem:[#allocation2 + $0xa2c] sm:$0xf]
    %v1800 = vld [vmem:[#allocation2 + $0xa38] sm:$0xf]
    %v1801 = vld [vmem:[#allocation2 + $0xa44] sm:$0xf]
    %v1802 = vld [vmem:[#allocation2 + $0xa50] sm:$0xf]
    %v1803 = vld [vmem:[#allocation2 + $0xa5c] sm:$0xf]
    %v1804 = vld [vmem:[#allocation2 + $0xa68] sm:$0xf]
    %v1805 = vld [vmem:[#allocation2 + $0xa74] sm:$0xf]
    %s1806 = scalar_lea.vmem [#allocation4], 18
    %v1807 = vld [vmem:[%s1806] sm:$0x1]
    %v1809 = vlaneseq
    %v1810 = vshrl.u32 %v1809, 7
    %v1811 = vsub.s32 0, %v1810
    %v1812 = vrot.slane %v1807, %v1811
    %v1830 = vunpack.c.l.b16 %v1790
    %v1831 = vunpack.c.l.b16 %v1791
    %v1832 = vunpack.c.l.b16 %v1792
    %v1833 = vunpack.c.l.b16 %v1793
    %v1834 = vunpack.c.l.b16 %v1794
    %v1835 = vunpack.c.l.b16 %v1795
    %v1836 = vunpack.c.l.b16 %v1796
    %v1837 = vunpack.c.l.b16 %v1797
    %v1838 = vunpack.c.l.b16 %v1798
    %v1839 = vunpack.c.l.b16 %v1799
    %v1840 = vunpack.c.l.b16 %v1800
    %v1841 = vunpack.c.l.b16 %v1801
    %v1842 = vunpack.c.l.b16 %v1802
    %v1843 = vunpack.c.l.b16 %v1803
    %v1844 = vunpack.c.l.b16 %v1804
    %v1845 = vunpack.c.l.b16 %v1805
    %v1846 = vpack.c.b16 %v1831, %v1830
    %v1847 = vpack.c.b16 %v1833, %v1832
    %v1848 = vpack.c.b16 %v1835, %v1834
    %v1849 = vpack.c.b16 %v1837, %v1836
    %v1850 = vpack.c.b16 %v1839, %v1838
    %v1851 = vpack.c.b16 %v1841, %v1840
    %v1852 = vpack.c.b16 %v1843, %v1842
    %v1853 = vpack.c.b16 %v1845, %v1844
    %1862 = vmatprep.subr.bf16.mxu0 0
    %1863 = vmatpush1.bf16.msra.mxu0 %v1853
    %1864 = vmatprep.subr.bf16.mxu0 0
    %1865 = vmatpush1.bf16.msra.mxu0 %v1852
    %1866 = vmatprep.subr.bf16.mxu0 0
    %1867 = vmatpush1.bf16.msra.mxu0 %v1851
    %1868 = vmatprep.subr.bf16.mxu0 0
    %1869 = vmatpush1.bf16.msra.mxu0 %v1850
    %1870 = vmatprep.subr.bf16.mxu0 0
    %1871 = vmatpush1.bf16.msra.mxu0 %v1849
    %1872 = vmatprep.subr.bf16.mxu0 0
    %1873 = vmatpush1.bf16.msra.mxu0 %v1848
    %1874 = vmatprep.subr.bf16.mxu0 0
    %1875 = vmatpush1.bf16.msra.mxu0 %v1847
    %1876 = vmatprep.subr.bf16.mxu0 0
    %1877 = vmatpush1.bf16.msra.mxu0 %v1846
    %1878 = vmatprep.subr.bf16.mxu0 0
    %1879 = vmatpush2.bf16.msra.mxu0 0
    %1880 = vmatprep.subr.bf16.mxu0 0
    %1881 = vmatpush2.bf16.msra.mxu0 0
    %1882 = vmatprep.subr.bf16.mxu0 0
    %1883 = vmatpush2.bf16.msra.mxu0 0
    %1884 = vmatprep.subr.bf16.mxu0 0
    %1885 = vmatpush2.bf16.msra.mxu0 0
    %1886 = vmatprep.subr.bf16.mxu0 0
    %1887 = vmatpush2.bf16.msra.mxu0 0
    %1888 = vmatprep.subr.bf16.mxu0 0
    %1889 = vmatpush2.bf16.msra.mxu0 0
    %1890 = vmatprep.subr.bf16.mxu0 0
    %1891 = vmatpush2.bf16.msra.mxu0 0
    %1892 = vmatprep.subr.bf16.mxu0 0
    %1893 = vmatpush2.bf16.msra.mxu0 0
    %1894 = vmatprep.mubr.bf16.mxu0 0
    %1895 = vmatmul.mubr.bf16.gmra.mxu0 %v1789
    %v1896 = vpop.f32.mrf.mxu0
    %v1897 = vadd.f32 %v1812, %v1896
    %v1898 = vpop.f32.mrf.mxu0
    %v1899 = vpop.f32.mrf.mxu0
    %v1900 = vpop.f32.mrf.mxu0
    %1901 = vdwg.mxu0
    %v1902 = vmax.f32 %v1897, 0.0
    %v1903 = vpack.c.bf16 %v1902, %v1902
    %v1904 = vld [vmem:[#allocation2 + $0xa80] sm:$0xf]
    %v1905 = vld [vmem:[#allocation2 + $0xa8c] sm:$0xf]
    %v1906 = vld [vmem:[#allocation2 + $0xa98] sm:$0xf]
    %v1907 = vld [vmem:[#allocation2 + $0xaa4] sm:$0xf]
    %v1908 = vld [vmem:[#allocation2 + $0xab0] sm:$0xf]
    %v1909 = vld [vmem:[#allocation2 + $0xabc] sm:$0xf]
    %v1910 = vld [vmem:[#allocation2 + $0xac8] sm:$0xf]
    %v1911 = vld [vmem:[#allocation2 + $0xad4] sm:$0xf]
    %v1912 = vld [vmem:[#allocation2 + $0xae0] sm:$0xf]
    %v1913 = vld [vmem:[#allocation2 + $0xaec] sm:$0xf]
    %v1914 = vld [vmem:[#allocation2 + $0xaf8] sm:$0xf]
    %v1915 = vld [vmem:[#allocation2 + $0xb04] sm:$0xf]
    %v1916 = vld [vmem:[#allocation2 + $0xb10] sm:$0xf]
    %v1917 = vld [vmem:[#allocation2 + $0xb1c] sm:$0xf]
    %v1918 = vld [vmem:[#allocation2 + $0xb28] sm:$0xf]
    %v1919 = vld [vmem:[#allocation2 + $0xb34] sm:$0xf]
    %s1920 = scalar_lea.vmem [#allocation4], 21
    %v1921 = vld [vmem:[%s1920] sm:$0x1]
    %v1923 = vlaneseq
    %v1924 = vshrl.u32 %v1923, 7
    %v1925 = vsub.s32 0, %v1924
    %v1926 = vrot.slane %v1921, %v1925
    %v1944 = vunpack.c.l.b16 %v1904
    %v1945 = vunpack.c.l.b16 %v1905
    %v1946 = vunpack.c.l.b16 %v1906
    %v1947 = vunpack.c.l.b16 %v1907
    %v1948 = vunpack.c.l.b16 %v1908
    %v1949 = vunpack.c.l.b16 %v1909
    %v1950 = vunpack.c.l.b16 %v1910
    %v1951 = vunpack.c.l.b16 %v1911
    %v1952 = vunpack.c.l.b16 %v1912
    %v1953 = vunpack.c.l.b16 %v1913
    %v1954 = vunpack.c.l.b16 %v1914
    %v1955 = vunpack.c.l.b16 %v1915
    %v1956 = vunpack.c.l.b16 %v1916
    %v1957 = vunpack.c.l.b16 %v1917
    %v1958 = vunpack.c.l.b16 %v1918
    %v1959 = vunpack.c.l.b16 %v1919
    %v1960 = vpack.c.b16 %v1945, %v1944
    %v1961 = vpack.c.b16 %v1947, %v1946
    %v1962 = vpack.c.b16 %v1949, %v1948
    %v1963 = vpack.c.b16 %v1951, %v1950
    %v1964 = vpack.c.b16 %v1953, %v1952
    %v1965 = vpack.c.b16 %v1955, %v1954
    %v1966 = vpack.c.b16 %v1957, %v1956
    %v1967 = vpack.c.b16 %v1959, %v1958
    %1976 = vmatprep.subr.bf16.mxu0 0
    %1977 = vmatpush1.bf16.msra.mxu0 %v1967
    %1978 = vmatprep.subr.bf16.mxu0 0
    %1979 = vmatpush1.bf16.msra.mxu0 %v1966
    %1980 = vmatprep.subr.bf16.mxu0 0
    %1981 = vmatpush1.bf16.msra.mxu0 %v1965
    %1982 = vmatprep.subr.bf16.mxu0 0
    %1983 = vmatpush1.bf16.msra.mxu0 %v1964
    %1984 = vmatprep.subr.bf16.mxu0 0
    %1985 = vmatpush1.bf16.msra.mxu0 %v1963
    %1986 = vmatprep.subr.bf16.mxu0 0
    %1987 = vmatpush1.bf16.msra.mxu0 %v1962
    %1988 = vmatprep.subr.bf16.mxu0 0
    %1989 = vmatpush1.bf16.msra.mxu0 %v1961
    %1990 = vmatprep.subr.bf16.mxu0 0
    %1991 = vmatpush1.bf16.msra.mxu0 %v1960
    %1992 = vmatprep.subr.bf16.mxu0 0
    %1993 = vmatpush2.bf16.msra.mxu0 0
    %1994 = vmatprep.subr.bf16.mxu0 0
    %1995 = vmatpush2.bf16.msra.mxu0 0
    %1996 = vmatprep.subr.bf16.mxu0 0
    %1997 = vmatpush2.bf16.msra.mxu0 0
    %1998 = vmatprep.subr.bf16.mxu0 0
    %1999 = vmatpush2.bf16.msra.mxu0 0
    %2000 = vmatprep.subr.bf16.mxu0 0
    %2001 = vmatpush2.bf16.msra.mxu0 0
    %2002 = vmatprep.subr.bf16.mxu0 0
    %2003 = vmatpush2.bf16.msra.mxu0 0
    %2004 = vmatprep.subr.bf16.mxu0 0
    %2005 = vmatpush2.bf16.msra.mxu0 0
    %2006 = vmatprep.subr.bf16.mxu0 0
    %2007 = vmatpush2.bf16.msra.mxu0 0
    %2008 = vmatprep.mubr.bf16.mxu0 0
    %2009 = vmatmul.mubr.bf16.gmra.mxu0 %v1903
    %v2010 = vpop.f32.mrf.mxu0
    %v2011 = vadd.f32 %v1926, %v2010
    %v2012 = vpop.f32.mrf.mxu0
    %v2013 = vpop.f32.mrf.mxu0
    %v2014 = vpop.f32.mrf.mxu0
    %2015 = vdwg.mxu0
    %v2016 = vmax.f32 %v2011, 0.0
    %v2017 = vpack.c.bf16 %v2016, %v2016
    %v2018 = vld [vmem:[#allocation2 + $0xb40] sm:$0xf]
    %v2019 = vld [vmem:[#allocation2 + $0xb4c] sm:$0xf]
    %v2020 = vld [vmem:[#allocation2 + $0xb58] sm:$0xf]
    %v2021 = vld [vmem:[#allocation2 + $0xb64] sm:$0xf]
    %v2022 = vld [vmem:[#allocation2 + $0xb70] sm:$0xf]
    %v2023 = vld [vmem:[#allocation2 + $0xb7c] sm:$0xf]
    %v2024 = vld [vmem:[#allocation2 + $0xb88] sm:$0xf]
    %v2025 = vld [vmem:[#allocation2 + $0xb94] sm:$0xf]
    %v2026 = vld [vmem:[#allocation2 + $0xba0] sm:$0xf]
    %v2027 = vld [vmem:[#allocation2 + $0xbac] sm:$0xf]
    %v2028 = vld [vmem:[#allocation2 + $0xbb8] sm:$0xf]
    %v2029 = vld [vmem:[#allocation2 + $0xbc4] sm:$0xf]
    %v2030 = vld [vmem:[#allocation2 + $0xbd0] sm:$0xf]
    %v2031 = vld [vmem:[#allocation2 + $0xbdc] sm:$0xf]
    %v2032 = vld [vmem:[#allocation2 + $0xbe8] sm:$0xf]
    %v2033 = vld [vmem:[#allocation2 + $0xbf4] sm:$0xf]
    %s2034 = scalar_lea.vmem [#allocation4], 24
    %v2035 = vld [vmem:[%s2034] sm:$0x1]
    %v2037 = vlaneseq
    %v2038 = vshrl.u32 %v2037, 7
    %v2039 = vsub.s32 0, %v2038
    %v2040 = vrot.slane %v2035, %v2039
    %v2058 = vunpack.c.l.b16 %v2018
    %v2059 = vunpack.c.l.b16 %v2019
    %v2060 = vunpack.c.l.b16 %v2020
    %v2061 = vunpack.c.l.b16 %v2021
    %v2062 = vunpack.c.l.b16 %v2022
    %v2063 = vunpack.c.l.b16 %v2023
    %v2064 = vunpack.c.l.b16 %v2024
    %v2065 = vunpack.c.l.b16 %v2025
    %v2066 = vunpack.c.l.b16 %v2026
    %v2067 = vunpack.c.l.b16 %v2027
    %v2068 = vunpack.c.l.b16 %v2028
    %v2069 = vunpack.c.l.b16 %v2029
    %v2070 = vunpack.c.l.b16 %v2030
    %v2071 = vunpack.c.l.b16 %v2031
    %v2072 = vunpack.c.l.b16 %v2032
    %v2073 = vunpack.c.l.b16 %v2033
    %v2074 = vpack.c.b16 %v2059, %v2058
    %v2075 = vpack.c.b16 %v2061, %v2060
    %v2076 = vpack.c.b16 %v2063, %v2062
    %v2077 = vpack.c.b16 %v2065, %v2064
    %v2078 = vpack.c.b16 %v2067, %v2066
    %v2079 = vpack.c.b16 %v2069, %v2068
    %v2080 = vpack.c.b16 %v2071, %v2070
    %v2081 = vpack.c.b16 %v2073, %v2072
    %2090 = vmatprep.subr.bf16.mxu0 0
    %2091 = vmatpush1.bf16.msra.mxu0 %v2081
    %2092 = vmatprep.subr.bf16.mxu0 0
    %2093 = vmatpush1.bf16.msra.mxu0 %v2080
    %2094 = vmatprep.subr.bf16.mxu0 0
    %2095 = vmatpush1.bf16.msra.mxu0 %v2079
    %2096 = vmatprep.subr.bf16.mxu0 0
    %2097 = vmatpush1.bf16.msra.mxu0 %v2078
    %2098 = vmatprep.subr.bf16.mxu0 0
    %2099 = vmatpush1.bf16.msra.mxu0 %v2077
    %2100 = vmatprep.subr.bf16.mxu0 0
    %2101 = vmatpush1.bf16.msra.mxu0 %v2076
    %2102 = vmatprep.subr.bf16.mxu0 0
    %2103 = vmatpush1.bf16.msra.mxu0 %v2075
    %2104 = vmatprep.subr.bf16.mxu0 0
    %2105 = vmatpush1.bf16.msra.mxu0 %v2074
    %2106 = vmatprep.subr.bf16.mxu0 0
    %2107 = vmatpush2.bf16.msra.mxu0 0
    %2108 = vmatprep.subr.bf16.mxu0 0
    %2109 = vmatpush2.bf16.msra.mxu0 0
    %2110 = vmatprep.subr.bf16.mxu0 0
    %2111 = vmatpush2.bf16.msra.mxu0 0
    %2112 = vmatprep.subr.bf16.mxu0 0
    %2113 = vmatpush2.bf16.msra.mxu0 0
    %2114 = vmatprep.subr.bf16.mxu0 0
    %2115 = vmatpush2.bf16.msra.mxu0 0
    %2116 = vmatprep.subr.bf16.mxu0 0
    %2117 = vmatpush2.bf16.msra.mxu0 0
    %2118 = vmatprep.subr.bf16.mxu0 0
    %2119 = vmatpush2.bf16.msra.mxu0 0
    %2120 = vmatprep.subr.bf16.mxu0 0
    %2121 = vmatpush2.bf16.msra.mxu0 0
    %2122 = vmatprep.mubr.bf16.mxu0 0
    %2123 = vmatmul.mubr.bf16.gmra.mxu0 %v2017
    %v2124 = vpop.f32.mrf.mxu0
    %v2125 = vadd.f32 %v2040, %v2124
    %v2126 = vpop.f32.mrf.mxu0
    %v2127 = vpop.f32.mrf.mxu0
    %v2128 = vpop.f32.mrf.mxu0
    %2129 = vdwg.mxu0
    %v2130 = vlaneseq
    %v2131 = vand.u32 %v2130, 127
    %vm2132 = vcmp.lt.s32.totalorder %v2131, 10
    %v2133 = vsel %vm2132, %v2125, -inf
    %2134 = vmax.xlane.f32.xlu0 %v2133
    %v2135 = vpop.xlane.xlu0 %2134
    %v2136 = vsub.f32 %v2133, %v2135
    %v2137 = vmul.f32 %v2136, 1.442695
    %v2138 = vpow.pop %v2137
    %2139 = vadd.xlane.f32.xlu0 %v2138
    %v2140 = vpop.xlane.xlu0 %2139
    %v2141 = vrcp.pop %v2140
    %v2142 = vmul.f32 %v2138, %v2141
    %2143 = vst [vmem:[%s3] sm:$0xff] %v2142
    // Predicated region
    $region22: #{net_forward.1} parent=1 // pred_check
      _
    $region23: #{net_forward.1} parent=1 // pred_check_branch
      %2145 = sbr.rel (0) target = $region25
    $region24: #{net_forward.1} parent=1 // pred_region
      _
    $region25: #{net_forward.1} parent=1 // pred_fallthru
      _
    // Predicated region
    $region26: #{net_forward.1} parent=1 // pred_check
      _
    $region27: #{net_forward.1} parent=1 // pred_check_branch
      %2147 = sbr.rel (0) target = $region29
    $region28: #{net_forward.1} parent=1 // pred_region
      _
    $region29: #{net_forward.1} parent=1 // pred_fallthru
      _
    %2148 = vsyncpa [#allocation3], 1
    %2149 = vsyncpa [#allocation5], 1

</llo_original>
